<compile_context>
chip_gen: v7x
topology: tpu7x:2x2x1
jax: 0.10.0
libtpu: 0.0.40
codegen_flags: <defaults>
</compile_context>

<pallas_src>
import functools
import math

import jax
import jax.numpy as jnp
from jax.experimental import pallas as pl
from jax.experimental.pallas import tpu as pltpu

_NEG_INF = -1e30


def _round_up(x, m):
    return ((x + m - 1) // m) * m


def _bf16_exp_supported():
    """bf16 EUP/VPU path exists on v6e/v7x; v5e and older stay f32."""
    try:
        kind = jax.devices()[0].device_kind.lower()
    except Exception:
        return False
    return ("v6" in kind) or ("v7" in kind)


@functools.lru_cache(maxsize=None)
def _gram_constant(d_head: int, l_seg: int, dtype_name: str):
    """[kron(I, G_re) | kron(I, G_im)]: time-domain Gram of the ortho rfft."""
    f = d_head // 2 + 1
    dd = jnp.arange(d_head, dtype=jnp.float32)[:, None]
    ff = jnp.arange(f, dtype=jnp.float32)[None, :]
    ang = 2.0 * jnp.pi * dd * ff / d_head
    cmat = jnp.cos(ang) / jnp.sqrt(jnp.float32(d_head))       # (D, F)
    smat = -jnp.sin(ang) / jnp.sqrt(jnp.float32(d_head))
    g_re = cmat @ cmat.T + smat @ smat.T                      # (D, D)
    g_im = smat @ cmat.T - cmat @ smat.T
    eye = jnp.eye(l_seg, dtype=jnp.float32)
    # NOTE: for D >= 128 a de-kron'd (D, 2D) constant would avoid the
    # block-diagonal zeros; kept kron'd so the in-kernel transform needs no
    # lane-crossing reshape and the contraction dim stays >= 128 for small D.
    g = jnp.concatenate([jnp.kron(eye, g_re), jnp.kron(eye, g_im)], axis=1)
    return g.astype(dtype_name)                                # (LD, 2*LD)


def _pick_tiles(n_heads, m_pad, n_pad, chain_budget_bytes=12 * 2**20):
    """Tile sizes that keep the per-step f32 score chain under budget
    (re-derived for v7x's 64 MiB physical VMEM; also fits v6e/v5e)."""
    tm = min(m_pad, 256)
    tn = min(n_pad, 512)
    per_head = 8 * tm * tn * 4        # ~8 live f32 (TM,TN) tensors per head
    th_cap = max(1, chain_budget_bytes // per_head)
    th = max(d for d in range(1, n_heads + 1)
             if n_heads % d == 0 and d <= th_cap)
    return th, tm, tn


def _fourier_flash_kernel(q_ref, k_ref, v_ref, g_ref, o_ref,
                          qg_sc, m_sc, l_sc, acc_sc,
                          *, logit_scale, n_valid, mask_n, exp_bf16):
    # q_ref: (TH, TM, LD)   k_ref/v_ref: (TH, TN, LD)   g_ref: (LD, 2*LD)
    ni = pl.program_id(3)
    th, tm, ld = q_ref.shape
    tn = k_ref.shape[1]

    @pl.when(ni == 0)
    def _init():
        m_sc[...] = jnp.full_like(m_sc, _NEG_INF)
        l_sc[...] = jnp.zeros_like(l_sc)
        acc_sc[...] = jnp.zeros_like(acc_sc)
        # Fused Gram transform of Q: one lane-dense MXU matmul yields both the
        # "real" and "imaginary" transforms.  Computed once per (b, h, m)
        # block and cached in VMEM across the whole (inner) N loop.
        q2d = q_ref[...].reshape(th * tm, ld)
        qg = jnp.dot(q2d, g_ref[...], preferred_element_type=jnp.float32)
        qg = qg.astype(q_ref.dtype)
        qg_sc[:, 0:tm, :] = qg[:, :ld].reshape(th, tm, ld)        # re rows
        qg_sc[:, tm:2 * tm, :] = qg[:, ld:].reshape(th, tm, ld)   # im rows

    k = k_ref[...]
    v = v_ref[...]

    # Fused correlation: re and im rows stacked on the sublane axis -> K is
    # streamed through the MXU once.  (K kept (TH, TN, LD): pre-transposing to
    # (TH, LD, TN) is only lane-dense when TN % 128 == 0.)
    s = jnp.einsum('hml,hnl->hmn', qg_sc[...], k,
                   preferred_element_type=jnp.float32)            # (TH, 2TM, TN)
    re = s[:, :tm, :]
    im = s[:, tm:, :]
    logits = jnp.sqrt(re * re + im * im) * logit_scale            # folded scale/sqrt(D)

    if mask_n:   # static: padded key columns exist -> exclude from softmax
        col = jax.lax.broadcasted_iota(jnp.int32, logits.shape, 2) + ni * tn
        logits = jnp.where(col < n_valid, logits, _NEG_INF)

    # Online (flash) softmax update; reductions / running state stay f32.
    m_prev = m_sc[...]
    m_new = jnp.maximum(m_prev, jnp.max(logits, axis=-1, keepdims=True))
    alpha = jnp.exp(m_prev - m_new)
    if exp_bf16:      # v6e/v7x: bf16 EUP path for the transcendental-heavy op
        p = jnp.exp((logits - m_new).astype(jnp.bfloat16))
    else:             # v5e and older: f32 exp
        p = jnp.exp(logits - m_new)
    l_sc[...] = alpha * l_sc[...] + jnp.sum(p, axis=-1, keepdims=True,
                                            dtype=jnp.float32)
    acc_sc[...] = alpha * acc_sc[...] + jnp.einsum(
        'hmn,hnx->hmx', p.astype(v.dtype), v,
        preferred_element_type=jnp.float32)
    m_sc[...] = m_new

    @pl.when(ni == pl.num_programs(3) - 1)
    def _finalize():
        # irfft(A @ rfft(V)) == A @ V  (A real, irfft linear, n = D, ortho).
        o_ref[...] = (acc_sc[...] *
                      pl.reciprocal(l_sc[...], approx=True)).astype(o_ref.dtype)


def fourier_attention(queries, keys, values, attn_mask=None, *, factor=1,
                      scale=None, head_flag=True, mxu_dtype=jnp.bfloat16,
                      out_dtype=None):
    # attn_mask accepted for API parity; the reference forward never applies it.
    del attn_mask
    B, L_q, H, D = queries.shape
    _, L_k, _, D_k = keys.shape
    _, L_v, _, D_v = values.shape
    L_s = factor
    scale = scale or 1.0 / math.sqrt(L_s * D)
    assert L_k == L_v and D == D_k == D_v
    assert L_s <= L_q and L_s <= L_v
    out_dtype = out_dtype or queries.dtype

    add_q = L_q % L_s
    add_v = L_v % L_s
    if head_flag:
        queries = queries[:, add_q:]
        keys = keys[:, add_v:]
        values = values[:, add_v:]
        addition_Q = queries[:, :add_q] if add_q != 0 else None
    else:
        queries = queries[:, :L_q - add_q] if add_q != 0 else queries
        keys = keys[:, :L_v - add_v] if add_v != 0 else keys
        values = values[:, :L_v - add_v] if add_v != 0 else values
        # Matches the PyTorch original: addition_Q taken *after* truncation.
        addition_Q = queries[:, -add_q:] if add_q != 0 else None

    M = queries.shape[1] // L_s
    N = keys.shape[1] // L_s
    LD = L_s * D

    # Sublane alignment (16 for bf16, 8 for f32) -> unmasked stores, clean tiles.
    align = 16 if jnp.dtype(mxu_dtype).itemsize == 2 else 8
    TM_CAP, TN_CAP = 256, 512
    Mp = _round_up(M, align)
    if Mp > TM_CAP:
        Mp = _round_up(Mp, TM_CAP)
    Np = _round_up(N, align)
    if Np > TN_CAP:
        Np = _round_up(Np, TN_CAP)
    TH, TM, TN = _pick_tiles(H, Mp, Np)

    # (B, L', H, D) -> (B, H, M|N (padded), L_s*D): lane-dense per-head rows.
    # NOTE: these transposes are extra HBM passes; a head-major upstream layout
    # would remove them, but the module's API contract is (B, L, H, D).
    def to_heads(x, S, Sp):
        x = (x.reshape(B, S, L_s, H, D)
              .transpose(0, 3, 1, 2, 4)
              .reshape(B, H, S, LD))
        if Sp != S:
            x = jnp.pad(x, ((0, 0), (0, 0), (0, Sp - S), (0, 0)))
        return x.astype(mxu_dtype)

    q_flat = to_heads(queries, M, Mp)
    k_flat = to_heads(keys, N, Np)
    v_flat = to_heads(values, N, Np)
    g = _gram_constant(D, L_s, jnp.dtype(mxu_dtype).name)

    exp_bf16 = (_bf16_exp_supported()
                and jnp.dtype(mxu_dtype) == jnp.dtype(jnp.bfloat16))

    kernel = functools.partial(
        _fourier_flash_kernel,
        logit_scale=scale / math.sqrt(D),   # |corr|/sqrt(D) and softmax scale folded
        n_valid=N, mask_n=(Np != N), exp_bf16=exp_bf16)

    grid = (B, H // TH, Mp // TM, Np // TN)

    # Explicit VMEM limit (v5e scoped default is only 16 MiB); tile sizes keep
    # the true footprint well under v7x's 64 MiB physical.
    bpe = jnp.dtype(mxu_dtype).itemsize
    obe = jnp.dtype(out_dtype).itemsize
    blk = (TH * TM * LD + 2 * TH * TN * LD) * bpe + TH * TM * LD * obe
    scratch = TH * 2 * TM * LD * bpe + TH * TM * LD * 4 + 2 * TH * TM * 128 * 4
    chain = 8 * TH * TM * TN * 4
    g_bytes = LD * 2 * LD * bpe
    vmem_limit = int(min(48 * 2**20,
                         max(32 * 2**20,
                             2 * (2 * blk + 2 * g_bytes + scratch + chain))))

    cost = pl.CostEstimate(
        flops=int(4 * B * H * Mp * LD * LD          # Gram transform (per M block)
                  + 4 * B * H * Mp * Np * LD        # fused re/im correlation
                  + 2 * B * H * Mp * Np * LD),      # A @ V
        transcendentals=int(B * H * Mp * Np + B * H * Mp),
        bytes_accessed=int((q_flat.size
                            + (Mp // TM) * (k_flat.size + v_flat.size)
                            + g.size) * bpe
                           + B * H * Mp * LD * obe))

    out = pl.pallas_call(
        kernel,
        out_shape=jax.ShapeDtypeStruct((B, H, Mp, LD), out_dtype),
        grid_spec=pltpu.PrefetchScalarGridSpec(
            num_scalar_prefetch=0,
            grid=grid,
            in_specs=[
                pl.BlockSpec((None, TH, TM, LD), lambda b, h, m, n: (b, h, m, 0)),
                pl.BlockSpec((None, TH, TN, LD), lambda b, h, m, n: (b, h, n, 0)),
                pl.BlockSpec((None, TH, TN, LD), lambda b, h, m, n: (b, h, n, 0)),
                # Grid-invariant constant: block index never changes, so it is
                # fetched once and not re-DMA'd between grid steps.
                pl.BlockSpec((LD, 2 * LD), lambda b, h, m, n: (0, 0)),
            ],
            out_specs=pl.BlockSpec((None, TH, TM, LD),
                                   lambda b, h, m, n: (b, h, m, 0)),
            scratch_shapes=[
                pltpu.VMEM((TH, 2 * TM, LD), mxu_dtype),   # cached Gram-transformed Q
                pltpu.VMEM((TH, TM, 1), jnp.float32),      # running max
                pltpu.VMEM((TH, TM, 1), jnp.float32),      # running denom
                pltpu.VMEM((TH, TM, LD), jnp.float32),     # running numerator
            ]),
        compiler_params=pltpu.CompilerParams(
            dimension_semantics=("parallel", "parallel", "parallel", "arbitrary"),
            vmem_limit_bytes=vmem_limit),
        cost_estimate=cost,
    )(q_flat, k_flat, v_flat, g)

    # Trim query-segment padding; (B, H, Mp, L_s*D) -> (B, M*L_s, H, D).
    V = (out[:, :, :M, :]
         .reshape(B, H, M, L_s, D)
         .transpose(0, 2, 3, 1, 4)
         .reshape(B, M * L_s, H, D))

    # nn.Dropout(p=0.1): identity in eval mode (no stochastic op emitted).
    if head_flag:
        if addition_Q is not None:
            V = jnp.concatenate([addition_Q.astype(V.dtype), V], axis=1)
    elif addition_Q is not None:
        V = jnp.concatenate([V, addition_Q.astype(V.dtype)], axis=1)

    # TODO(synk): output_attention=True path (returning the full A) not implemented.
    return V, None


def _reference(queries, keys, values, *, factor, scale=None, head_flag=True):
    """Pure-JAX mirror of the PyTorch forward (uses jnp.fft) for verification."""
    B, L_q, H, D = queries.shape
    L_v = values.shape[1]
    L_s = factor
    scale = scale or 1.0 / math.sqrt(L_s * D)
    add_q = L_q % L_s
    add_v = L_v % L_s
    if head_flag:
        queries = queries[:, add_q:]
        keys = keys[:, add_v:]
        values = values[:, add_v:]
        addition_Q = queries[:, :add_q] if add_q != 0 else None
    else:
        queries = queries[:, :L_q - add_q] if add_q != 0 else queries
        keys = keys[:, :L_v - add_v] if add_v != 0 else keys
        values = values[:, :L_v - add_v] if add_v != 0 else values
        addition_Q = queries[:, -add_q:] if add_q != 0 else None
    seg_q = queries.reshape(B, -1, L_s, H, D)
    seg_k = keys.reshape(B, -1, L_s, H, D)
    seg_v = values.reshape(B, -1, L_s, H, D)
    qf = jnp.fft.rfft(seg_q, axis=-1, norm='ortho')
    kf = jnp.fft.rfft(seg_k, axis=-1, norm='ortho')
    vf = jnp.fft.rfft(seg_v, axis=-1, norm='ortho')
    corr = jnp.einsum('bmlhd,bnlhd->bhmn', qf, jnp.conj(kf)) / math.sqrt(D)
    A = jax.nn.softmax(scale * jnp.abs(corr), axis=-1)
    tmp = jnp.einsum('bhmn,bnlhd->bmlhd', A.astype(vf.dtype), vf)
    V = jnp.fft.irfft(tmp, n=D, axis=-1, norm='ortho').reshape(B, -1, H, D)
    if head_flag:
        if addition_Q is not None:
            V = jnp.concatenate([addition_Q, V], axis=1)
    elif addition_Q is not None:
        V = jnp.concatenate([V, addition_Q], axis=1)
    return V


if __name__ == "__main__":
    key = jax.random.PRNGKey(0)
    kq, kk, kv = jax.random.split(key, 3)

    # 1) Small demo shape: (B, L, H, D) = (2, 16, 4, 32), factor (L_s) = 4.
    B, L, H, D = 2, 16, 4, 32
    factor = 4
    q = jax.random.normal(kq, (B, L, H, D), dtype=jnp.float32)
    k = jax.random.normal(kk, (B, L, H, D), dtype=jnp.float32)
    v = jax.random.normal(kv, (B, L, H, D), dtype=jnp.float32)
    ref = _reference(q, k, v, factor=factor)

    out, attn = fourier_attention(q, k, v, None, factor=factor)
    out = jax.block_until_ready(out)
    assert out.shape == (B, L, H, D)
    assert attn is None
    err_bf16 = float(jnp.max(jnp.abs(out - ref)))
    assert jnp.allclose(out, ref, atol=2e-2, rtol=2e-2), err_bf16

    # 2) f32 MXU path: verifies the FFT-elimination algebra is (near-)exact.
    out32, _ = fourier_attention(q, k, v, None, factor=factor,
                                 mxu_dtype=jnp.float32)
    out32 = jax.block_until_ready(out32)
    err_f32 = float(jnp.max(jnp.abs(out32 - ref)))
    assert jnp.allclose(out32, ref, atol=5e-3, rtol=5e-3), err_f32

    # 3) Ragged sequence length: both addition_Q concat paths.
    L2 = 19
    q2 = jax.random.normal(kq, (B, L2, H, D), dtype=jnp.float32)
    k2 = jax.random.normal(kk, (B, L2, H, D), dtype=jnp.float32)
    v2 = jax.random.normal(kv, (B, L2, H, D), dtype=jnp.float32)
    for flag in (True, False):
        o2, _ = fourier_attention(q2, k2, v2, None, factor=factor,
                                  head_flag=flag)
        o2 = jax.block_until_ready(o2)
        r2 = _reference(q2, k2, v2, factor=factor, head_flag=flag)
        assert o2.shape == (B, L2, H, D)
        err_rag = float(jnp.max(jnp.abs(o2 - r2)))
        assert jnp.allclose(o2, r2, atol=2e-2, rtol=2e-2), (flag, err_rag)

    # 4) Multi-tile case (M = N = 520): several M tiles, two N tiles ->
    #    exercises online-softmax accumulation across key tiles and the
    #    padded-key-column masking.
    B3, L3, H3, D3, f3 = 1, 1040, 2, 64, 2
    q3 = jax.random.normal(kq, (B3, L3, H3, D3), dtype=jnp.float32)
    k3 = jax.random.normal(kk, (B3, L3, H3, D3), dtype=jnp.float32)
    v3 = jax.random.normal(kv, (B3, L3, H3, D3), dtype=jnp.float32)
    o3, _ = fourier_attention(q3, k3, v3, None, factor=f3)
    o3 = jax.block_until_ready(o3)
    r3 = _reference(q3, k3, v3, factor=f3)
    err_big = float(jnp.max(jnp.abs(o3 - r3)))
    assert jnp.allclose(o3, r3, atol=2e-2, rtol=2e-2), err_big

    print("KERNEL_OK")
</pallas_src>

<mosaic_0001>
module attributes {stable_mosaic.version = 11 : i64} {
  func.func @_fourier_flash_kernel(%arg0: i32, %arg1: i32, %arg2: i32, %arg3: i32, %arg4: memref<1x4x16x128xbf16, #tpu.memory_space<vmem>>, %arg5: memref<1x4x16x128xbf16, #tpu.memory_space<vmem>>, %arg6: memref<1x4x16x128xbf16, #tpu.memory_space<vmem>>, %arg7: memref<128x256xbf16, #tpu.memory_space<vmem>>, %arg8: memref<1x4x16x128xf32, #tpu.memory_space<vmem>>, %arg9: memref<4x32x128xbf16, #tpu.memory_space<vmem>>, %arg10: memref<4x16x1xf32, #tpu.memory_space<vmem>>, %arg11: memref<4x16x1xf32, #tpu.memory_space<vmem>>, %arg12: memref<4x16x128xf32, #tpu.memory_space<vmem>>) attributes {dimension_semantics = [#tpu.dimension_semantics<parallel>, #tpu.dimension_semantics<parallel>, #tpu.dimension_semantics<parallel>, #tpu.dimension_semantics<arbitrary>], iteration_bounds = array<i64: 2, 1, 1, 1>, scalar_prefetch = 0 : i64, scratch_operands = 4 : i64, tpu.core_type = #tpu.core_type<tc>, window_params = [{transform_indices = @transform_0, window_bounds = array<i64: 1, 4, 16, 128>}, {transform_indices = @transform_1, window_bounds = array<i64: 1, 4, 16, 128>}, {transform_indices = @transform_2, window_bounds = array<i64: 1, 4, 16, 128>}, {pipeline_mode = #tpu.pipeline_mode<synchronous>, transform_indices = @transform_3, window_bounds = array<i64: 128, 256>}, {transform_indices = @transform_4, window_bounds = array<i64: 1, 4, 16, 128>}]} {
    %c0_i32 = arith.constant 0 : i32
    %0 = arith.cmpi eq, %arg3, %c0_i32 : i32
    %1 = arith.extui %0 : i1 to i32
    %c0_i32_0 = arith.constant 0 : i32
    %2 = arith.cmpi ne, %1, %c0_i32_0 : i32
    scf.if %2 {
      %cst_36 = arith.constant -1.000000e+30 : f32
      %51 = vector.broadcast %cst_36 : f32 to vector<4x16x1xf32>
      %c0_37 = arith.constant 0 : index
      %c0_38 = arith.constant 0 : index
      %c0_39 = arith.constant 0 : index
      %52 = vector.load %arg10[%c0_37, %c0_38, %c0_39] : memref<4x16x1xf32, #tpu.memory_space<vmem>>, vector<4x16x1xf32>
      tpu.vector_store %arg10[%c0_37, %c0_38, %c0_39], %51 {strides = array<i32>} : memref<4x16x1xf32, #tpu.memory_space<vmem>>, vector<4x16x1xf32>,
      %cst_40 = arith.constant 0.000000e+00 : f32
      %53 = vector.broadcast %cst_40 : f32 to vector<4x16x1xf32>
      %c0_41 = arith.constant 0 : index
      %c0_42 = arith.constant 0 : index
      %c0_43 = arith.constant 0 : index
      %54 = vector.load %arg11[%c0_41, %c0_42, %c0_43] : memref<4x16x1xf32, #tpu.memory_space<vmem>>, vector<4x16x1xf32>
      tpu.vector_store %arg11[%c0_41, %c0_42, %c0_43], %53 {strides = array<i32>} : memref<4x16x1xf32, #tpu.memory_space<vmem>>, vector<4x16x1xf32>,
      %cst_44 = arith.constant 0.000000e+00 : f32
      %55 = vector.broadcast %cst_44 : f32 to vector<4x16x128xf32>
      %c0_45 = arith.constant 0 : index
      %c0_46 = arith.constant 0 : index
      %c0_47 = arith.constant 0 : index
      %56 = vector.load %arg12[%c0_45, %c0_46, %c0_47] : memref<4x16x128xf32, #tpu.memory_space<vmem>>, vector<4x16x128xf32>
      tpu.vector_store %arg12[%c0_45, %c0_46, %c0_47], %55 {strides = array<i32>} : memref<4x16x128xf32, #tpu.memory_space<vmem>>, vector<4x16x128xf32>,
      %c0_48 = arith.constant 0 : index
      %c0_49 = arith.constant 0 : index
      %c0_50 = arith.constant 0 : index
      %c0_51 = arith.constant 0 : index
      %57 = vector.load %arg4[%c0_48, %c0_49, %c0_50, %c0_51] : memref<1x4x16x128xbf16, #tpu.memory_space<vmem>>, vector<1x4x16x128xbf16>
      %58 = vector.shape_cast %57 : vector<1x4x16x128xbf16> to vector<4x16x128xbf16>
      %59 = vector.shape_cast %58 : vector<4x16x128xbf16> to vector<64x128xbf16>
      %c0_52 = arith.constant 0 : index
      %c0_53 = arith.constant 0 : index
      %60 = vector.load %arg7[%c0_52, %c0_53] : memref<128x256xbf16, #tpu.memory_space<vmem>>, vector<128x256xbf16>
      %cst_54 = arith.constant dense<0.000000e+00> : vector<64x256xf32>
      %61 = tpu.matmul %59, %60, %cst_54 {dimension_numbers = #tpu.dot_dimension_numbers<[1], [0], [0], [1], [0, 0, 1, 1], [], []>} : vector<64x128xbf16>, vector<128x256xbf16>, vector<64x256xf32> -> vector<64x256xf32>
      %62 = arith.truncf %61 : vector<64x256xf32> to vector<64x256xbf16>
      %63 = vector.extract_strided_slice %62 {offsets = [0, 0], sizes = [64, 128], strides = [1, 1]} : vector<64x256xbf16> to vector<64x128xbf16>
      %64 = vector.shape_cast %63 : vector<64x128xbf16> to vector<4x16x128xbf16>
      %c0_55 = arith.constant 0 : index
      %c0_56 = arith.constant 0 : index
      %c0_57 = arith.constant 0 : index
      %65 = vector.load %arg9[%c0_55, %c0_56, %c0_57] : memref<4x32x128xbf16, #tpu.memory_space<vmem>>, vector<4x16x128xbf16>
      tpu.vector_store %arg9[%c0_55, %c0_56, %c0_57], %64 {strides = array<i32>} : memref<4x32x128xbf16, #tpu.memory_space<vmem>>, vector<4x16x128xbf16>,
      %66 = vector.extract_strided_slice %62 {offsets = [0, 128], sizes = [64, 128], strides = [1, 1]} : vector<64x256xbf16> to vector<64x128xbf16>
      %67 = vector.shape_cast %66 : vector<64x128xbf16> to vector<4x16x128xbf16>
      %c0_58 = arith.constant 0 : index
      %c16 = arith.constant 16 : index
      %c0_59 = arith.constant 0 : index
      %68 = vector.load %arg9[%c0_58, %c16, %c0_59] : memref<4x32x128xbf16, #tpu.memory_space<vmem>>, vector<4x16x128xbf16>
      tpu.vector_store %arg9[%c0_58, %c16, %c0_59], %67 {strides = array<i32>} : memref<4x32x128xbf16, #tpu.memory_space<vmem>>, vector<4x16x128xbf16>,
    } else {
    }
    %c0 = arith.constant 0 : index
    %c0_1 = arith.constant 0 : index
    %c0_2 = arith.constant 0 : index
    %c0_3 = arith.constant 0 : index
    %3 = vector.load %arg5[%c0, %c0_1, %c0_2, %c0_3] : memref<1x4x16x128xbf16, #tpu.memory_space<vmem>>, vector<1x4x16x128xbf16>
    %4 = vector.shape_cast %3 : vector<1x4x16x128xbf16> to vector<4x16x128xbf16>
    %c0_4 = arith.constant 0 : index
    %c0_5 = arith.constant 0 : index
    %c0_6 = arith.constant 0 : index
    %c0_7 = arith.constant 0 : index
    %5 = vector.load %arg6[%c0_4, %c0_5, %c0_6, %c0_7] : memref<1x4x16x128xbf16, #tpu.memory_space<vmem>>, vector<1x4x16x128xbf16>
    %6 = vector.shape_cast %5 : vector<1x4x16x128xbf16> to vector<4x16x128xbf16>
    %c0_8 = arith.constant 0 : index
    %c0_9 = arith.constant 0 : index
    %c0_10 = arith.constant 0 : index
    %7 = vector.load %arg9[%c0_8, %c0_9, %c0_10] : memref<4x32x128xbf16, #tpu.memory_space<vmem>>, vector<4x32x128xbf16>
    "tpu.trace_start"() <{level = 10 : i32, message = "hml,hnl->hmn"}> : () -> ()
    %cst = arith.constant dense<0.000000e+00> : vector<4x32x16xf32>
    %8 = tpu.matmul %7, %4, %cst {dimension_numbers = #tpu.dot_dimension_numbers<[2], [2], [1], [1], [0, 0, 0, 1, 1, 1], [0], [0]>} : vector<4x32x128xbf16>, vector<4x16x128xbf16>, vector<4x32x16xf32> -> vector<4x32x16xf32>
    "tpu.trace_stop"() : () -> ()
    %9 = vector.extract_strided_slice %8 {offsets = [0, 0, 0], sizes = [4, 16, 16], strides = [1, 1, 1]} : vector<4x32x16xf32> to vector<4x16x16xf32>
    %10 = vector.extract_strided_slice %8 {offsets = [0, 16, 0], sizes = [4, 16, 16], strides = [1, 1, 1]} : vector<4x32x16xf32> to vector<4x16x16xf32>
    %11 = arith.mulf %9, %9 : vector<4x16x16xf32>
    %12 = arith.mulf %10, %10 : vector<4x16x16xf32>
    %13 = arith.addf %11, %12 : vector<4x16x16xf32>
    %14 = math.sqrt %13 : vector<4x16x16xf32>
    %cst_11 = arith.constant 1.562500e-02 : f32
    %15 = vector.broadcast %cst_11 : f32 to vector<4x16x16xf32>
    %16 = arith.mulf %14, %15 : vector<4x16x16xf32>
    %17 = tpu.iota {dimensions = array<i32: 2>} : vector<4x16x16xi32>
    %c16_i32 = arith.constant 16 : i32
    %18 = arith.muli %arg3, %c16_i32 : i32
    %19 = vector.broadcast %18 : i32 to vector<4x16x16xi32>
    %20 = arith.addi %17, %19 : vector<4x16x16xi32>
    %c4_i32 = arith.constant 4 : i32
    %21 = vector.broadcast %c4_i32 : i32 to vector<4x16x16xi32>
    %22 = arith.cmpi slt, %20, %21 : vector<4x16x16xi32>
    %cst_12 = arith.constant -1.000000e+30 : f32
    %23 = vector.broadcast %cst_12 : f32 to vector<4x16x16xf32>
    %24 = arith.select %22, %16, %23 : vector<4x16x16xi1>, vector<4x16x16xf32>
    %c0_13 = arith.constant 0 : index
    %c0_14 = arith.constant 0 : index
    %c0_15 = arith.constant 0 : index
    %25 = vector.load %arg10[%c0_13, %c0_14, %c0_15] : memref<4x16x1xf32, #tpu.memory_space<vmem>>, vector<4x16x1xf32>
    %cst_16 = arith.constant dense<0xFF800000> : vector<4x16xf32>
    %26 = vector.multi_reduction <maximumf>, %24, %cst_16 [2] : vector<4x16x16xf32> to vector<4x16xf32>
    %27 = vector.shape_cast %26 : vector<4x16xf32> to vector<4x16x1xf32>
    %28 = arith.maximumf %25, %27 : vector<4x16x1xf32>
    %29 = arith.subf %25, %28 : vector<4x16x1xf32>
    %30 = math.exp %29 : vector<4x16x1xf32>
    %31 = vector.broadcast %28 : vector<4x16x1xf32> to vector<4x16x16xf32>
    %32 = arith.subf %24, %31 : vector<4x16x16xf32>
    %33 = math.exp %32 : vector<4x16x16xf32>
    %c0_17 = arith.constant 0 : index
    %c0_18 = arith.constant 0 : index
    %c0_19 = arith.constant 0 : index
    %34 = vector.load %arg11[%c0_17, %c0_18, %c0_19] : memref<4x16x1xf32, #tpu.memory_space<vmem>>, vector<4x16x1xf32>
    %35 = arith.mulf %30, %34 : vector<4x16x1xf32>
    %cst_20 = arith.constant dense<0.000000e+00> : vector<4x16xf32>
    %36 = vector.multi_reduction <add>, %33, %cst_20 [2] : vector<4x16x16xf32> to vector<4x16xf32>
    %37 = vector.shape_cast %36 : vector<4x16xf32> to vector<4x16x1xf32>
    %38 = arith.addf %35, %37 : vector<4x16x1xf32>
    %c0_21 = arith.constant 0 : index
    %c0_22 = arith.constant 0 : index
    %c0_23 = arith.constant 0 : index
    %39 = vector.load %arg11[%c0_21, %c0_22, %c0_23] : memref<4x16x1xf32, #tpu.memory_space<vmem>>, vector<4x16x1xf32>
    tpu.vector_store %arg11[%c0_21, %c0_22, %c0_23], %38 {strides = array<i32>} : memref<4x16x1xf32, #tpu.memory_space<vmem>>, vector<4x16x1xf32>,
    %c0_24 = arith.constant 0 : index
    %c0_25 = arith.constant 0 : index
    %c0_26 = arith.constant 0 : index
    %40 = vector.load %arg12[%c0_24, %c0_25, %c0_26] : memref<4x16x128xf32, #tpu.memory_space<vmem>>, vector<4x16x128xf32>
    %41 = vector.broadcast %30 : vector<4x16x1xf32> to vector<4x16x128xf32>
    %42 = arith.mulf %41, %40 : vector<4x16x128xf32>
    %43 = arith.truncf %33 : vector<4x16x16xf32> to vector<4x16x16xbf16>
    "tpu.trace_start"() <{level = 10 : i32, message = "hmn,hnx->hmx"}> : () -> ()
    %cst_27 = arith.constant dense<0.000000e+00> : vector<4x16x128xf32>
    %44 = tpu.matmul %43, %6, %cst_27 {dimension_numbers = #tpu.dot_dimension_numbers<[2], [1], [1], [2], [0, 0, 0, 1, 1, 2], [0], [0]>} : vector<4x16x16xbf16>, vector<4x16x128xbf16>, vector<4x16x128xf32> -> vector<4x16x128xf32>
    "tpu.trace_stop"() : () -> ()
    %45 = arith.addf %42, %44 : vector<4x16x128xf32>
    %c0_28 = arith.constant 0 : index
    %c0_29 = arith.constant 0 : index
    %c0_30 = arith.constant 0 : index
    %46 = vector.load %arg12[%c0_28, %c0_29, %c0_30] : memref<4x16x128xf32, #tpu.memory_space<vmem>>, vector<4x16x128xf32>
    tpu.vector_store %arg12[%c0_28, %c0_29, %c0_30], %45 {strides = array<i32>} : memref<4x16x128xf32, #tpu.memory_space<vmem>>, vector<4x16x128xf32>,
    %c0_31 = arith.constant 0 : index
    %c0_32 = arith.constant 0 : index
    %c0_33 = arith.constant 0 : index
    %47 = vector.load %arg10[%c0_31, %c0_32, %c0_33] : memref<4x16x1xf32, #tpu.memory_space<vmem>>, vector<4x16x1xf32>
    tpu.vector_store %arg10[%c0_31, %c0_32, %c0_33], %28 {strides = array<i32>} : memref<4x16x1xf32, #tpu.memory_space<vmem>>, vector<4x16x1xf32>,
    %c0_i32_34 = arith.constant 0 : i32
    %48 = arith.cmpi eq, %arg3, %c0_i32_34 : i32
    %49 = arith.extui %48 : i1 to i32
    %c0_i32_35 = arith.constant 0 : i32
    %50 = arith.cmpi ne, %49, %c0_i32_35 : i32
    scf.if %50 {
      %c0_36 = arith.constant 0 : index
      %c0_37 = arith.constant 0 : index
      %c0_38 = arith.constant 0 : index
      %51 = vector.load %arg12[%c0_36, %c0_37, %c0_38] : memref<4x16x128xf32, #tpu.memory_space<vmem>>, vector<4x16x128xf32>
      %c0_39 = arith.constant 0 : index
      %c0_40 = arith.constant 0 : index
      %c0_41 = arith.constant 0 : index
      %52 = vector.load %arg11[%c0_39, %c0_40, %c0_41] : memref<4x16x1xf32, #tpu.memory_space<vmem>>, vector<4x16x1xf32>
      %53 = tpu.reciprocal %52 {approx = true} : vector<4x16x1xf32> -> vector<4x16x1xf32>
      %54 = vector.broadcast %53 : vector<4x16x1xf32> to vector<4x16x128xf32>
      %55 = arith.mulf %51, %54 : vector<4x16x128xf32>
      %c0_42 = arith.constant 0 : index
      %c0_43 = arith.constant 0 : index
      %c0_44 = arith.constant 0 : index
      %c0_45 = arith.constant 0 : index
      %56 = vector.load %arg8[%c0_42, %c0_43, %c0_44, %c0_45] : memref<1x4x16x128xf32, #tpu.memory_space<vmem>>, vector<1x4x16x128xf32>
      %57 = vector.shape_cast %56 : vector<1x4x16x128xf32> to vector<4x16x128xf32>
      %58 = vector.shape_cast %55 : vector<4x16x128xf32> to vector<1x4x16x128xf32>
      tpu.vector_store %arg8[%c0_42, %c0_43, %c0_44, %c0_45], %58 {strides = array<i32>} : memref<1x4x16x128xf32, #tpu.memory_space<vmem>>, vector<1x4x16x128xf32>,
    } else {
    }
    return
  }
  func.func @transform_0(%arg0: i32, %arg1: i32, %arg2: i32, %arg3: i32) -> (i32, i32, i32, i32) {
    %c0_i32 = arith.constant 0 : i32
    %c0_i32_0 = arith.constant 0 : i32
    return %arg0, %arg1, %arg2, %c0_i32 : i32, i32, i32, i32
  }
  func.func @transform_1(%arg0: i32, %arg1: i32, %arg2: i32, %arg3: i32) -> (i32, i32, i32, i32) {
    %c0_i32 = arith.constant 0 : i32
    %c0_i32_0 = arith.constant 0 : i32
    return %arg0, %arg1, %arg3, %c0_i32 : i32, i32, i32, i32
  }
  func.func @transform_2(%arg0: i32, %arg1: i32, %arg2: i32, %arg3: i32) -> (i32, i32, i32, i32) {
    %c0_i32 = arith.constant 0 : i32
    %c0_i32_0 = arith.constant 0 : i32
    return %arg0, %arg1, %arg3, %c0_i32 : i32, i32, i32, i32
  }
  func.func @transform_3(%arg0: i32, %arg1: i32, %arg2: i32, %arg3: i32) -> (i32, i32) {
    %c0_i32 = arith.constant 0 : i32
    %c0_i32_0 = arith.constant 0 : i32
    %c0_i32_1 = arith.constant 0 : i32
    return %c0_i32, %c0_i32_0 : i32, i32
  }
  func.func @transform_4(%arg0: i32, %arg1: i32, %arg2: i32, %arg3: i32) -> (i32, i32, i32, i32) {
    %c0_i32 = arith.constant 0 : i32
    %c0_i32_0 = arith.constant 0 : i32
    return %arg0, %arg1, %arg2, %c0_i32 : i32, i32, i32, i32
  }
}

</mosaic_0001>

<llo_original>
// kernel: tpu_custom_call.1
$region0: #{tpu_custom_call.1}
  #allocation0 [shape = 'u32[]', space=smem, size = 0x4, offset = 0x4, fixed_abs, tag = 'smem constant byte address 0x4 - core index']
  #allocation1 [shape = 'u32[144,128]{1,0:T(1,128)}', space=vmem, size = 0x12000, scoped, tag = 'internal scratch']
  #allocation2 [shape = 'bf16[4,32,128]{2,1,0:T(16,128)(2,1)}', space=vmem, size = 0x8000, scoped, tag = 'scratch operand']
  #allocation3 [shape = 'f32[4,16,1]{2,1,0:T(8,128)}', space=vmem, size = 0x8000, scoped, tag = 'scratch operand']
  #allocation4 [shape = 'f32[4,16,1]{2,1,0:T(8,128)}', space=vmem, size = 0x8000, scoped, tag = 'scratch operand']
  #allocation5 [shape = 'f32[4,16,128]{2,1,0:T(8,128)}', space=vmem, size = 0x8000, scoped, tag = 'scratch operand']
  %s0 = inlined_call_operand.hbm [shape: bf16[2,4,16,128], index: 0, kind: input, shape index: {}]
  %s1 = inlined_call_operand.hbm [shape: bf16[2,4,16,128], index: 1, kind: input, shape index: {}]
  %s2 = inlined_call_operand.hbm [shape: bf16[2,4,16,128], index: 2, kind: input, shape index: {}]
  %s3 = inlined_call_operand.hbm [shape: bf16[128,256], index: 3, kind: input, shape index: {}]
  %s4 = inlined_call_operand.hbm [shape: f32[2,4,16,128], index: 4, kind: output, shape index: {}]
  %s5 = sld [smem:[#allocation0]]
  $region73: #{tpu_custom_call.1} parent=0
    _
  %s7 = ssub.s32 1, %s5
  %s8 = scalar_select 0, %s7, %s5
  $region1: #{tpu_custom_call.1} parent=0
    #allocation6 [shape = 'u8[32768]{0}', space=vmem, size = 0x8000, scoped, tag = 'input window, operand 0']
    #allocation7 [shape = 's32[2]{0}', space=sflag, size = 0x8, scoped, tag = 'scoped memory for tpu_custom_call.1']
    #allocation8 [shape = 's32[2]{0}', space=sflag, size = 0x8, scoped, tag = 'scoped memory for tpu_custom_call.1']
    #allocation9 [shape = 'u8[32768]{0}', space=vmem, size = 0x8000, scoped, tag = 'input window, operand 1']
    #allocation10 [shape = 's32[2]{0}', space=sflag, size = 0x8, scoped, tag = 'scoped memory for tpu_custom_call.1']
    #allocation11 [shape = 'u8[32768]{0}', space=vmem, size = 0x8000, scoped, tag = 'input window, operand 2']
    #allocation12 [shape = 'u8[65536]{0}', space=vmem, size = 0x10000, scoped, tag = 'input window, operand 3, single buffered']
    #allocation13 [shape = 's32[1]{0}', space=sflag, size = 0x4, scoped, tag = 'scoped memory for tpu_custom_call.1']
    #allocation14 [shape = 'u8[65536]{0}', space=vmem, size = 0x10000, scoped, tag = 'output window, operand 0']
    %9 = vsyncpa [#allocation7], 0
    %s10 = scalar_lea.sflag [#allocation7], 1
    %11 = vsyncpa %s10, 0
    %12 = vsyncpa [#allocation10], 0
    %s13 = scalar_lea.sflag [#allocation10], 1
    %14 = vsyncpa %s13, 0
    %15 = vsyncpa [#allocation13], 0
    %16 = vsyncpa [#allocation8], 0
    %s17 = scalar_lea.sflag [#allocation8], 1
    %18 = vsyncpa %s17, 0
    loop: start=0, step=1, limit=4
    $region2: #{tpu_custom_call.1} parent=1 // loop_pre_header
      _
    $region3: #{tpu_custom_call.1} parent=1 // loop_header
      %s20 = sphi 0, %s24
      %p21 = scmp.ge.s32.totalorder %s20, 4
      %s27 = sphi 0, %s53
      %s28 = sphi 0, %s49
      %s29 = sphi 0, %s45
      %s30 = sphi 0, %s41
      %s31 = sphi 0, %s27
      %s32 = sphi 0, %s28
      %s33 = sphi 0, %s29
      %s34 = sphi 0, %s30
      %s35 = sphi 0, %s31
      %s36 = sphi 0, %s32
      %s37 = sphi 0, %s33
      %s38 = sphi 0, %s34
      %s60 = sphi 0, %s62
      %s63 = sphi 0, %s60
      %s64 = sphi 0, %s63
      %s80 = sphi 0, %s64
      %s90 = sphi 0, %s92
      %s93 = sphi 0, %s90
      %s94 = sphi 0, %s93
      %s110 = sphi 0, %s94
      %s120 = sphi 0, %s122
      %s123 = sphi 0, %s120
      %s124 = sphi 0, %s123
      %s140 = sphi 0, %s124
      %s144 = sphi 0, %s144
      %s146 = sphi 0, %s144
      %s147 = sphi 0, %s146
      %s161 = sphi 0, %s147
      %s171 = sphi 0, %s173
      %s174 = sphi 0, %s171
      %s175 = sphi 0, %s174
      %s191 = sphi 0, %s175
    $region4: #{tpu_custom_call.1} parent=1 // loop_header_branch
      %23 = sbr.rel (%p21) target = $region8
    $region5: #{tpu_custom_call.1} parent=1 // loop_body
      %s25 = ssub.s32 %s20, 1
      %s26 = ssub.s32 %s20, 2
      %s39 = sadd.s32 1, %s30
      %p40 = scmp.ge.s32.totalorder %s39, 1
      %s41 = scalar_select %p40, 0, %s39
      %s42 = sadd.s32 1, %s29
      %s43 = scalar_select %p40, %s42, %s29
      %p44 = scmp.ge.s32.totalorder %s43, 1
      %s45 = scalar_select %p44, 0, %s43
      %s46 = sadd.s32 1, %s28
      %s47 = scalar_select %p44, %s46, %s28
      %p48 = scmp.ge.s32.totalorder %s47, 1
      %s49 = scalar_select %p48, 0, %s47
      %s50 = sadd.s32 1, %s27
      %s51 = scalar_select %p48, %s50, %s27
      %p52 = scmp.ge.s32.totalorder %s51, 2
      %s53 = scalar_select %p52, 0, %s51
      %s54 = ssub.s32 %s27, %s53
      %s55 = ssub.s32 %s28, %s49
      %s56 = sor.u32 %s54, %s55
      %s57 = ssub.s32 %s29, %s45
      %s58 = sor.u32 %s56, %s57
      %p59 = scmp.eq.s32.totalorder %s58, 0
      %s61 = sadd.s32 %s60, 1
      %s62 = scalar_select %p59, %s60, %s61
      %p65 = pneg %p59
      %p66 = scmp.eq.s32.totalorder %s20, 1
      %p67 = por %p65, %p66
      %p68 = scmp.ne.s32.totalorder %s60, %s63
      %p69 = scmp.eq.s32.totalorder %s20, 0
      %p70 = por %p68, %p69
      %p71 = scmp.ne.s32.totalorder %s60, %s63
      %p72 = scmp.eq.s32.totalorder %s25, 1
      %p73 = por %p71, %p72
      %p74 = scmp.ne.s32.totalorder %s63, %s64
      %p75 = scmp.eq.s32.totalorder %s25, 0
      %p76 = por %p74, %p75
      %p77 = scmp.ne.s32.totalorder %s63, %s64
      %p78 = scmp.eq.s32.totalorder %s26, 1
      %p79 = por %p77, %p78
      %p81 = scmp.ne.s32.totalorder %s64, %s80
      %p82 = scmp.eq.s32.totalorder %s26, 0
      %p83 = por %p81, %p82
      %s84 = ssub.s32 %s27, %s53
      %s85 = ssub.s32 %s28, %s49
      %s86 = sor.u32 %s84, %s85
      %s87 = ssub.s32 %s30, %s41
      %s88 = sor.u32 %s86, %s87
      %p89 = scmp.eq.s32.totalorder %s88, 0
      %s91 = sadd.s32 %s90, 1
      %s92 = scalar_select %p89, %s90, %s91
      %p95 = pneg %p89
      %p96 = scmp.eq.s32.totalorder %s20, 1
      %p97 = por %p95, %p96
      %p98 = scmp.ne.s32.totalorder %s90, %s93
      %p99 = scmp.eq.s32.totalorder %s20, 0
      %p100 = por %p98, %p99
      %p101 = scmp.ne.s32.totalorder %s90, %s93
      %p102 = scmp.eq.s32.totalorder %s25, 1
      %p103 = por %p101, %p102
      %p104 = scmp.ne.s32.totalorder %s93, %s94
      %p105 = scmp.eq.s32.totalorder %s25, 0
      %p106 = por %p104, %p105
      %p107 = scmp.ne.s32.totalorder %s93, %s94
      %p108 = scmp.eq.s32.totalorder %s26, 1
      %p109 = por %p107, %p108
      %p111 = scmp.ne.s32.totalorder %s94, %s110
      %p112 = scmp.eq.s32.totalorder %s26, 0
      %p113 = por %p111, %p112
      %s114 = ssub.s32 %s27, %s53
      %s115 = ssub.s32 %s28, %s49
      %s116 = sor.u32 %s114, %s115
      %s117 = ssub.s32 %s30, %s41
      %s118 = sor.u32 %s116, %s117
      %p119 = scmp.eq.s32.totalorder %s118, 0
      %s121 = sadd.s32 %s120, 1
      %s122 = scalar_select %p119, %s120, %s121
      %p125 = pneg %p119
      %p126 = scmp.eq.s32.totalorder %s20, 1
      %p127 = por %p125, %p126
      %p128 = scmp.ne.s32.totalorder %s120, %s123
      %p129 = scmp.eq.s32.totalorder %s20, 0
      %p130 = por %p128, %p129
      %p131 = scmp.ne.s32.totalorder %s120, %s123
      %p132 = scmp.eq.s32.totalorder %s25, 1
      %p133 = por %p131, %p132
      %p134 = scmp.ne.s32.totalorder %s123, %s124
      %p135 = scmp.eq.s32.totalorder %s25, 0
      %p136 = por %p134, %p135
      %p137 = scmp.ne.s32.totalorder %s123, %s124
      %p138 = scmp.eq.s32.totalorder %s26, 1
      %p139 = por %p137, %p138
      %p141 = scmp.ne.s32.totalorder %s124, %s140
      %p142 = scmp.eq.s32.totalorder %s26, 0
      %p143 = por %p141, %p142
      %s145 = sadd.s32 %s144, 1
      %p148 = scmp.eq.s32.totalorder %s20, 1
      %p149 = scmp.ne.s32.totalorder %s144, %s146
      %p150 = scmp.eq.s32.totalorder %s20, 0
      %p151 = por %p149, %p150
      %p152 = scmp.ne.s32.totalorder %s144, %s146
      %p153 = scmp.eq.s32.totalorder %s25, 1
      %p154 = por %p152, %p153
      %p155 = scmp.ne.s32.totalorder %s146, %s147
      %p156 = scmp.eq.s32.totalorder %s25, 0
      %p157 = por %p155, %p156
      %p158 = scmp.ne.s32.totalorder %s146, %s147
      %p159 = scmp.eq.s32.totalorder %s26, 1
      %p160 = por %p158, %p159
      %p162 = scmp.ne.s32.totalorder %s147, %s161
      %p163 = scmp.eq.s32.totalorder %s26, 0
      %p164 = por %p162, %p163
      %s165 = ssub.s32 %s27, %s53
      %s166 = ssub.s32 %s28, %s49
      %s167 = sor.u32 %s165, %s166
      %s168 = ssub.s32 %s29, %s45
      %s169 = sor.u32 %s167, %s168
      %p170 = scmp.eq.s32.totalorder %s169, 0
      %s172 = sadd.s32 %s171, 1
      %s173 = scalar_select %p170, %s171, %s172
      %p176 = pneg %p170
      %p177 = scmp.eq.s32.totalorder %s20, 1
      %p178 = por %p176, %p177
      %p179 = scmp.ne.s32.totalorder %s171, %s174
      %p180 = scmp.eq.s32.totalorder %s20, 0
      %p181 = por %p179, %p180
      %p182 = scmp.ne.s32.totalorder %s171, %s174
      %p183 = scmp.eq.s32.totalorder %s25, 1
      %p184 = por %p182, %p183
      %p185 = scmp.ne.s32.totalorder %s174, %s175
      %p186 = scmp.eq.s32.totalorder %s25, 0
      %p187 = por %p185, %p186
      %p188 = scmp.ne.s32.totalorder %s174, %s175
      %p189 = scmp.eq.s32.totalorder %s26, 1
      %p190 = por %p188, %p189
      %p192 = scmp.ne.s32.totalorder %s175, %s191
      %p193 = scmp.eq.s32.totalorder %s26, 0
      %p194 = por %p192, %p193
      %p195 = scmp.le.s32.totalorder 1, %s20
      %p196 = scmp.lt.s32.totalorder %s20, 3
      %p197 = pnand %p195, %p196
      %p198 = pneg %p197
      // Predicated region
      $region9: #{tpu_custom_call.1} parent=5 // pred_check
        _
      $region10: #{tpu_custom_call.1} parent=5 // pred_check_branch
        %200 = sbr.rel (%p197) target = $region12
      $region11: #{tpu_custom_call.1} parent=5 // pred_region
        %s201 = ssub.s32 %s20, 1
        // Predicated region
        $region13: #{tpu_custom_call.1} parent=11 // pred_check
          %p202 = pneg %p157
        $region14: #{tpu_custom_call.1} parent=11 // pred_check_branch
          %204 = sbr.rel (%p202) target = $region16
        $region15: #{tpu_custom_call.1} parent=11 // pred_region
          %s206 = ssub.s32 2048, 2048
          %207 = vsyncadd [#allocation13], %s206
          %s208 = sshll.u32 [#allocation12], 4
          %s209 = int_to_ptr.vmem [resolvable:$true] %s208
          %214 = dma.hbm_to_vmem [thread:$0]  %s3, 2048, %s209, [#allocation13], 128, 128, 8
        $region16: #{tpu_custom_call.1} parent=11 // pred_fallthru
          _
      $region12: #{tpu_custom_call.1} parent=5 // pred_fallthru
        _
      %p215 = scmp.lt.s32.totalorder %s20, 2
      // Predicated region
      $region17: #{tpu_custom_call.1} parent=5 // pred_check
        %p216 = pneg %p215
      $region18: #{tpu_custom_call.1} parent=5 // pred_check_branch
        %218 = sbr.rel (%p216) target = $region20
      $region19: #{tpu_custom_call.1} parent=5 // pred_region
        // Predicated region
        $region21: #{tpu_custom_call.1} parent=19 // pred_check
          %p219 = pneg %p70
        $region22: #{tpu_custom_call.1} parent=19 // pred_check_branch
          %221 = sbr.rel (%p219) target = $region24
        $region23: #{tpu_custom_call.1} parent=19 // pred_region
          %s222 = sand.u32 %s60, 1
          %s223 = scalar_lea.sflag [#allocation7], %s222
          %s224 = sand.u32 %s60, 1
          %s225 = smul.addr %s224, 32
          %s226 = scalar_lea.vmem [#allocation6], %s225
          %s227 = smul.u32 4, %s28
          %s228 = smul.u32 2, %s29
          %s230 = ssub.s32 512, 512
          %231 = vsyncadd %s223, %s230
          %s232 = smul.addr %s227, 2
          %s233 = sadd.s32 %s228, %s232
          %s234 = smul.addr %s27, 8
          %s235 = sadd.s32 %s233, %s234
          %s236 = smul.addr %s235, 64
          %s237 = scalar_lea.hbm %s0, %s236
          %s238 = sshll.u32 %s226, 4
          %s239 = int_to_ptr.vmem [resolvable:$true] %s238
          %244 = dma.hbm_to_vmem [thread:$0]  %s237, 512, %s239, %s223, 64, 64, 4
        $region24: #{tpu_custom_call.1} parent=19 // pred_fallthru
          _
        // Predicated region
        $region25: #{tpu_custom_call.1} parent=19 // pred_check
          %p245 = pneg %p100
        $region26: #{tpu_custom_call.1} parent=19 // pred_check_branch
          %247 = sbr.rel (%p245) target = $region28
        $region27: #{tpu_custom_call.1} parent=19 // pred_region
          %s248 = sand.u32 %s20, 1
          %s249 = scalar_lea.sflag [#allocation10], %s248
          %s250 = sand.u32 %s90, 1
          %s251 = smul.addr %s250, 32
          %s252 = scalar_lea.vmem [#allocation9], %s251
          %s253 = smul.u32 4, %s28
          %s254 = smul.u32 2, %s30
          %s256 = ssub.s32 512, 512
          %257 = vsyncadd %s249, %s256
          %s258 = smul.addr %s253, 2
          %s259 = sadd.s32 %s254, %s258
          %s260 = smul.addr %s27, 8
          %s261 = sadd.s32 %s259, %s260
          %s262 = smul.addr %s261, 64
          %s263 = scalar_lea.hbm %s1, %s262
          %s264 = sshll.u32 %s252, 4
          %s265 = int_to_ptr.vmem [resolvable:$true] %s264
          %270 = dma.hbm_to_vmem [thread:$0]  %s263, 512, %s265, %s249, 64, 64, 4
        $region28: #{tpu_custom_call.1} parent=19 // pred_fallthru
          _
        // Predicated region
        $region29: #{tpu_custom_call.1} parent=19 // pred_check
          %p271 = pneg %p130
        $region30: #{tpu_custom_call.1} parent=19 // pred_check_branch
          %273 = sbr.rel (%p271) target = $region32
        $region31: #{tpu_custom_call.1} parent=19 // pred_region
          %s274 = sand.u32 %s20, 1
          %s275 = scalar_lea.sflag [#allocation10], %s274
          %s276 = sand.u32 %s120, 1
          %s277 = smul.addr %s276, 32
          %s278 = scalar_lea.vmem [#allocation11], %s277
          %s279 = smul.u32 4, %s28
          %s280 = smul.u32 2, %s30
          %s282 = ssub.s32 512, 512
          %283 = vsyncadd %s275, %s282
          %s284 = smul.addr %s279, 2
          %s285 = sadd.s32 %s280, %s284
          %s286 = smul.addr %s27, 8
          %s287 = sadd.s32 %s285, %s286
          %s288 = smul.addr %s287, 64
          %s289 = scalar_lea.hbm %s2, %s288
          %s290 = sshll.u32 %s278, 4
          %s291 = int_to_ptr.vmem [resolvable:$true] %s290
          %296 = dma.hbm_to_vmem [thread:$0]  %s289, 512, %s291, %s275, 64, 64, 4
        $region32: #{tpu_custom_call.1} parent=19 // pred_fallthru
          _
      $region20: #{tpu_custom_call.1} parent=5 // pred_fallthru
        _
      %p297 = scmp.le.s32.totalorder 1, %s20
      %p298 = scmp.lt.s32.totalorder %s20, 3
      %p299 = pnand %p297, %p298
      %p300 = pneg %p299
      // Predicated region
      $region33: #{tpu_custom_call.1} parent=5 // pred_check
        _
      $region34: #{tpu_custom_call.1} parent=5 // pred_check_branch
        %302 = sbr.rel (%p299) target = $region36
      $region35: #{tpu_custom_call.1} parent=5 // pred_region
        %s303 = ssub.s32 %s20, 1
        %s304 = sand.u32 %s63, 1
        %s305 = scalar_lea.sflag [#allocation7], %s304
        %s306 = sand.u32 %s63, 1
        %s307 = smul.addr %s306, 32
        %s308 = scalar_lea.vmem [#allocation6], %s307
        // Predicated region
        $region37: #{tpu_custom_call.1} parent=35 // pred_check
          %p309 = pneg %p76
        $region38: #{tpu_custom_call.1} parent=35 // pred_check_branch
          %311 = sbr.rel (%p309) target = $region40
        $region39: #{tpu_custom_call.1} parent=35 // pred_region
          %312 = dma.done %s305, 512
        $region40: #{tpu_custom_call.1} parent=35 // pred_fallthru
          _
        %s313 = sand.u32 %s25, 1
        %s314 = scalar_lea.sflag [#allocation10], %s313
        %s315 = sand.u32 %s93, 1
        %s316 = smul.addr %s315, 32
        %s317 = scalar_lea.vmem [#allocation9], %s316
        // Predicated region
        $region41: #{tpu_custom_call.1} parent=35 // pred_check
          %p318 = pneg %p106
        $region42: #{tpu_custom_call.1} parent=35 // pred_check_branch
          %320 = sbr.rel (%p318) target = $region44
        $region43: #{tpu_custom_call.1} parent=35 // pred_region
          %321 = dma.done %s314, 512
        $region44: #{tpu_custom_call.1} parent=35 // pred_fallthru
          _
        %s322 = sand.u32 %s25, 1
        %s323 = scalar_lea.sflag [#allocation10], %s322
        %s324 = sand.u32 %s123, 1
        %s325 = smul.addr %s324, 32
        %s326 = scalar_lea.vmem [#allocation11], %s325
        // Predicated region
        $region45: #{tpu_custom_call.1} parent=35 // pred_check
          %p327 = pneg %p136
        $region46: #{tpu_custom_call.1} parent=35 // pred_check_branch
          %329 = sbr.rel (%p327) target = $region48
        $region47: #{tpu_custom_call.1} parent=35 // pred_region
          %330 = dma.done %s323, 512
        $region48: #{tpu_custom_call.1} parent=35 // pred_fallthru
          _
        // Predicated region
        $region49: #{tpu_custom_call.1} parent=35 // pred_check
          %p331 = pneg %p157
        $region50: #{tpu_custom_call.1} parent=35 // pred_check_branch
          %333 = sbr.rel (%p331) target = $region52
        $region51: #{tpu_custom_call.1} parent=35 // pred_region
          %334 = dma.done [#allocation13], 2048
        $region52: #{tpu_custom_call.1} parent=35 // pred_fallthru
          _
        %s335 = sand.u32 %s63, 1
        %s336 = scalar_lea.sflag [#allocation7], %s335
        %s337 = sand.u32 %s63, 1
        %s338 = smul.addr %s337, 32
        %s339 = scalar_lea.vmem [#allocation6], %s338
        %p340 = pneg %p76
        %p341 = pneg %p73
        %s342 = sand.u32 %s25, 1
        %s343 = scalar_lea.sflag [#allocation10], %s342
        %s344 = sand.u32 %s93, 1
        %s345 = smul.addr %s344, 32
        %s346 = scalar_lea.vmem [#allocation9], %s345
        %p347 = pneg %p106
        %p348 = pneg %p103
        %s349 = sand.u32 %s25, 1
        %s350 = scalar_lea.sflag [#allocation10], %s349
        %s351 = sand.u32 %s123, 1
        %s352 = smul.addr %s351, 32
        %s353 = scalar_lea.vmem [#allocation11], %s352
        %p354 = pneg %p136
        %p355 = pneg %p133
        %p356 = pneg %p157
        %p357 = pneg %p154
        %p358 = pneg %p187
        %p359 = pneg %p184
        %s360 = sand.u32 %s174, 1
        %s361 = scalar_lea.sflag [#allocation8], %s360
        %s362 = sand.u32 %s174, 1
        %s363 = smul.addr %s362, 64
        %s364 = scalar_lea.vmem [#allocation14], %s363
        %s365 = smul.u32 4, %s32
        %s366 = smul.u32 2, %s33
        %s367 = smul.u32 4, %s32
        %s368 = smul.u32 2, %s34
        %s369 = smul.u32 4, %s32
        %s370 = smul.u32 2, %s34
        %s371 = smul.u32 4, %s32
        %s372 = smul.u32 2, %s33
        %p374 = scmp.eq.s32.totalorder %s34, 0
        // Predicated region
        $region53: #{tpu_custom_call.1} parent=35 // pred_check
          %p375 = pneg %p374
        $region54: #{tpu_custom_call.1} parent=35 // pred_check_branch
          %377 = sbr.rel (%p375) target = $region56
        $region55: #{tpu_custom_call.1} parent=35 // pred_region
          %vm378 = vcmask 7168
          %379 = vst.msk [vmem:[#allocation3] sm:$0xff] %vm378, -1e+30
          %380 = vst.msk [vmem:[#allocation3 + $0x8] sm:$0xff] %vm378, -1e+30
          %381 = vst.msk [vmem:[#allocation3 + $0x10] sm:$0xff] %vm378, -1e+30
          %382 = vst.msk [vmem:[#allocation3 + $0x18] sm:$0xff] %vm378, -1e+30
          %383 = vst.msk [vmem:[#allocation3 + $0x20] sm:$0xff] %vm378, -1e+30
          %384 = vst.msk [vmem:[#allocation3 + $0x28] sm:$0xff] %vm378, -1e+30
          %385 = vst.msk [vmem:[#allocation3 + $0x30] sm:$0xff] %vm378, -1e+30
          %386 = vst.msk [vmem:[#allocation3 + $0x38] sm:$0xff] %vm378, -1e+30
          %387 = vst.msk [vmem:[#allocation4] sm:$0xff] %vm378, 0.0
          %388 = vst.msk [vmem:[#allocation4 + $0x8] sm:$0xff] %vm378, 0.0
          %389 = vst.msk [vmem:[#allocation4 + $0x10] sm:$0xff] %vm378, 0.0
          %390 = vst.msk [vmem:[#allocation4 + $0x18] sm:$0xff] %vm378, 0.0
          %391 = vst.msk [vmem:[#allocation4 + $0x20] sm:$0xff] %vm378, 0.0
          %392 = vst.msk [vmem:[#allocation4 + $0x28] sm:$0xff] %vm378, 0.0
          %393 = vst.msk [vmem:[#allocation4 + $0x30] sm:$0xff] %vm378, 0.0
          %394 = vst.msk [vmem:[#allocation4 + $0x38] sm:$0xff] %vm378, 0.0
          %395 = vst [vmem:[#allocation5] sm:$0xff] 0.0
          %396 = vst [vmem:[#allocation5 + $0x8] sm:$0xff] 0.0
          %397 = vst [vmem:[#allocation5 + $0x10] sm:$0xff] 0.0
          %398 = vst [vmem:[#allocation5 + $0x18] sm:$0xff] 0.0
          %399 = vst [vmem:[#allocation5 + $0x20] sm:$0xff] 0.0
          %400 = vst [vmem:[#allocation5 + $0x28] sm:$0xff] 0.0
          %401 = vst [vmem:[#allocation5 + $0x30] sm:$0xff] 0.0
          %402 = vst [vmem:[#allocation5 + $0x38] sm:$0xff] 0.0
          %v403 = vld [vmem:[%s308] sm:$0xf]
          %v404 = vld [vmem:[%s308 + $0x4] sm:$0xf]
          %v405 = vld [vmem:[%s308 + $0x8] sm:$0xf]
          %v406 = vld [vmem:[%s308 + $0xc] sm:$0xf]
          %v407 = vld [vmem:[%s308 + $0x10] sm:$0xf]
          %v408 = vld [vmem:[%s308 + $0x14] sm:$0xf]
          %v409 = vld [vmem:[%s308 + $0x18] sm:$0xf]
          %v410 = vld [vmem:[%s308 + $0x1c] sm:$0xf]
          %v411 = vld [vmem:[#allocation12] sm:$0xff]
          %v412 = vld [vmem:[#allocation12 + $0x8] sm:$0xff]
          %v413 = vld [vmem:[#allocation12 + $0x10] sm:$0xff]
          %v414 = vld [vmem:[#allocation12 + $0x18] sm:$0xff]
          %v415 = vld [vmem:[#allocation12 + $0x20] sm:$0xff]
          %v416 = vld [vmem:[#allocation12 + $0x28] sm:$0xff]
          %v417 = vld [vmem:[#allocation12 + $0x30] sm:$0xff]
          %v418 = vld [vmem:[#allocation12 + $0x38] sm:$0xff]
          %v419 = vld [vmem:[#allocation12 + $0x40] sm:$0xff]
          %v420 = vld [vmem:[#allocation12 + $0x48] sm:$0xff]
          %v421 = vld [vmem:[#allocation12 + $0x50] sm:$0xff]
          %v422 = vld [vmem:[#allocation12 + $0x58] sm:$0xff]
          %v423 = vld [vmem:[#allocation12 + $0x60] sm:$0xff]
          %v424 = vld [vmem:[#allocation12 + $0x68] sm:$0xff]
          %v425 = vld [vmem:[#allocation12 + $0x70] sm:$0xff]
          %v426 = vld [vmem:[#allocation12 + $0x78] sm:$0xff]
          %v435 = vunpack.c.l.b16 %v403
          %v436 = vunpack.c.l.b16 %v404
          %v437 = vunpack.c.l.b16 %v405
          %v438 = vunpack.c.l.b16 %v406
          %v439 = vunpack.c.l.b16 %v407
          %v440 = vunpack.c.l.b16 %v408
          %v441 = vunpack.c.l.b16 %v409
          %v442 = vunpack.c.l.b16 %v410
          %v443 = vpack.c.b16 %v436, %v435
          %v444 = vpack.c.b16 %v438, %v437
          %v445 = vpack.c.b16 %v440, %v439
          %v446 = vpack.c.b16 %v442, %v441
          %v467 = vunpack.c.l.b16 %v411
          %v468 = vunpack.c.h.b16 %v411
          %v469 = vunpack.c.l.b16 %v412
          %v470 = vunpack.c.h.b16 %v412
          %v471 = vunpack.c.l.b16 %v413
          %v472 = vunpack.c.h.b16 %v413
          %v473 = vunpack.c.l.b16 %v414
          %v474 = vunpack.c.h.b16 %v414
          %v475 = vunpack.c.l.b16 %v415
          %v476 = vunpack.c.h.b16 %v415
          %v477 = vunpack.c.l.b16 %v416
          %v478 = vunpack.c.h.b16 %v416
          %v479 = vunpack.c.l.b16 %v417
          %v480 = vunpack.c.h.b16 %v417
          %v481 = vunpack.c.l.b16 %v418
          %v482 = vunpack.c.h.b16 %v418
          %v483 = vunpack.c.l.b16 %v419
          %v484 = vunpack.c.h.b16 %v419
          %v485 = vunpack.c.l.b16 %v420
          %v486 = vunpack.c.h.b16 %v420
          %v487 = vunpack.c.l.b16 %v421
          %v488 = vunpack.c.h.b16 %v421
          %v489 = vunpack.c.l.b16 %v422
          %v490 = vunpack.c.h.b16 %v422
          %v491 = vunpack.c.l.b16 %v423
          %v492 = vunpack.c.h.b16 %v423
          %v493 = vunpack.c.l.b16 %v424
          %v494 = vunpack.c.h.b16 %v424
          %v495 = vunpack.c.l.b16 %v425
          %v496 = vunpack.c.h.b16 %v425
          %v497 = vunpack.c.l.b16 %v426
          %v498 = vunpack.c.h.b16 %v426
          %v499 = vpack.c.b16 %v469, %v467
          %v500 = vpack.c.b16 %v470, %v468
          %v501 = vpack.c.b16 %v473, %v471
          %v502 = vpack.c.b16 %v474, %v472
          %v503 = vpack.c.b16 %v477, %v475
          %v504 = vpack.c.b16 %v478, %v476
          %v505 = vpack.c.b16 %v481, %v479
          %v506 = vpack.c.b16 %v482, %v480
          %v507 = vpack.c.b16 %v485, %v483
          %v508 = vpack.c.b16 %v486, %v484
          %v509 = vpack.c.b16 %v489, %v487
          %v510 = vpack.c.b16 %v490, %v488
          %v511 = vpack.c.b16 %v493, %v491
          %v512 = vpack.c.b16 %v494, %v492
          %v513 = vpack.c.b16 %v497, %v495
          %v514 = vpack.c.b16 %v498, %v496
          %531 = vmatprep.subr.bf16.mxu0 %v500
          %532 = vmatpush1.bf16.msra.mxu0 %v499
          %533 = vmatprep.subr.bf16.mxu0 %v502
          %534 = vmatpush1.bf16.msra.mxu0 %v501
          %535 = vmatprep.subr.bf16.mxu0 %v504
          %536 = vmatpush1.bf16.msra.mxu0 %v503
          %537 = vmatprep.subr.bf16.mxu0 %v506
          %538 = vmatpush1.bf16.msra.mxu0 %v505
          %539 = vmatprep.subr.bf16.mxu0 %v508
          %540 = vmatpush1.bf16.msra.mxu0 %v507
          %541 = vmatprep.subr.bf16.mxu0 %v510
          %542 = vmatpush1.bf16.msra.mxu0 %v509
          %543 = vmatprep.subr.bf16.mxu0 %v512
          %544 = vmatpush1.bf16.msra.mxu0 %v511
          %545 = vmatprep.subr.bf16.mxu0 %v514
          %546 = vmatpush1.bf16.msra.mxu0 %v513
          %547 = vmatprep.subr.bf16.mxu0 0
          %548 = vmatpush1.bf16.msra.mxu0 0
          %549 = vmatprep.subr.bf16.mxu0 0
          %550 = vmatpush1.bf16.msra.mxu0 0
          %551 = vmatprep.subr.bf16.mxu0 0
          %552 = vmatpush1.bf16.msra.mxu0 0
          %553 = vmatprep.subr.bf16.mxu0 0
          %554 = vmatpush1.bf16.msra.mxu0 0
          %555 = vmatprep.subr.bf16.mxu0 0
          %556 = vmatpush1.bf16.msra.mxu0 0
          %557 = vmatprep.subr.bf16.mxu0 0
          %558 = vmatpush1.bf16.msra.mxu0 0
          %559 = vmatprep.subr.bf16.mxu0 0
          %560 = vmatpush1.bf16.msra.mxu0 0
          %561 = vmatprep.subr.bf16.mxu0 0
          %562 = vmatpush1.bf16.msra.mxu0 0
          %563 = vmatprep.mubr.bf16.mxu0 0
          %564 = vmatmul.mubr.bf16.gmra.mrb[0].mxu0 %v443
          %v565 = vpop.f32.mrb[0].mxu0
          %v566 = vadd.f32 0.0, %v565
          %v567 = vpop.f32.mrb[0].mxu0
          %v568 = vadd.f32 0.0, %v567
          %v569 = vpop.f32.mrb[0].mxu0
          %v570 = vadd.f32 0.0, %v569
          %v571 = vpop.f32.mrb[0].mxu0
          %v572 = vadd.f32 0.0, %v571
          %573 = vmatprep.mubr.bf16.mxu0 0
          %574 = vmatmul.mubr.bf16.gmra.mrb[0].mxu0 %v444
          %v575 = vpop.f32.mrb[0].mxu0
          %v576 = vadd.f32 0.0, %v575
          %v577 = vpop.f32.mrb[0].mxu0
          %v578 = vadd.f32 0.0, %v577
          %v579 = vpop.f32.mrb[0].mxu0
          %v580 = vadd.f32 0.0, %v579
          %v581 = vpop.f32.mrb[0].mxu0
          %v582 = vadd.f32 0.0, %v581
          %583 = vmatprep.mubr.bf16.mxu0 0
          %584 = vmatmul.mubr.bf16.gmra.mrb[0].mxu0 %v445
          %v585 = vpop.f32.mrb[0].mxu0
          %v586 = vadd.f32 0.0, %v585
          %v587 = vpop.f32.mrb[0].mxu0
          %v588 = vadd.f32 0.0, %v587
          %v589 = vpop.f32.mrb[0].mxu0
          %v590 = vadd.f32 0.0, %v589
          %v591 = vpop.f32.mrb[0].mxu0
          %v592 = vadd.f32 0.0, %v591
          %593 = vmatprep.mubr.bf16.mxu0 0
          %594 = vmatmul.mubr.bf16.gmra.mrb[0].mxu0 %v446
          %v595 = vpop.f32.mrb[0].mxu0
          %v596 = vadd.f32 0.0, %v595
          %v597 = vpop.f32.mrb[0].mxu0
          %v598 = vadd.f32 0.0, %v597
          %v599 = vpop.f32.mrb[0].mxu0
          %v600 = vadd.f32 0.0, %v599
          %v601 = vpop.f32.mrb[0].mxu0
          %v602 = vadd.f32 0.0, %v601
          %603 = vdwg.mxu0
          %v604 = vpack.c.bf16 %v570, %v566
          %v605 = vpack.c.bf16 %v572, %v568
          %v606 = vpack.c.bf16 %v580, %v576
          %v607 = vpack.c.bf16 %v582, %v578
          %v608 = vpack.c.bf16 %v590, %v586
          %v609 = vpack.c.bf16 %v592, %v588
          %v610 = vpack.c.bf16 %v600, %v596
          %v611 = vpack.c.bf16 %v602, %v598
          %612 = vst [vmem:[#allocation2] sm:$0xff] %v604
          %613 = vst [vmem:[#allocation2 + $0x10] sm:$0xff] %v606
          %614 = vst [vmem:[#allocation2 + $0x20] sm:$0xff] %v608
          %615 = vst [vmem:[#allocation2 + $0x30] sm:$0xff] %v610
          %616 = vst [vmem:[#allocation2 + $0x8] sm:$0xff] %v605
          %617 = vst [vmem:[#allocation2 + $0x18] sm:$0xff] %v607
          %618 = vst [vmem:[#allocation2 + $0x28] sm:$0xff] %v609
          %619 = vst [vmem:[#allocation2 + $0x38] sm:$0xff] %v611
        $region56: #{tpu_custom_call.1} parent=35 // pred_fallthru
          _
        %v620 = vld [vmem:[%s317] sm:$0xf]
        %v621 = vld [vmem:[%s317 + $0x4] sm:$0xf]
        %v622 = vld [vmem:[%s317 + $0x8] sm:$0xf]
        %v623 = vld [vmem:[%s317 + $0xc] sm:$0xf]
        %v624 = vld [vmem:[%s317 + $0x10] sm:$0xf]
        %v625 = vld [vmem:[%s317 + $0x14] sm:$0xf]
        %v626 = vld [vmem:[%s317 + $0x18] sm:$0xf]
        %v627 = vld [vmem:[%s317 + $0x1c] sm:$0xf]
        %v628 = vld [vmem:[%s326] sm:$0xf]
        %v629 = vld [vmem:[%s326 + $0x4] sm:$0xf]
        %v630 = vld [vmem:[%s326 + $0x8] sm:$0xf]
        %v631 = vld [vmem:[%s326 + $0xc] sm:$0xf]
        %v632 = vld [vmem:[%s326 + $0x10] sm:$0xf]
        %v633 = vld [vmem:[%s326 + $0x14] sm:$0xf]
        %v634 = vld [vmem:[%s326 + $0x18] sm:$0xf]
        %v635 = vld [vmem:[%s326 + $0x1c] sm:$0xf]
        %v636 = vld [vmem:[#allocation2] sm:$0xff]
        %v637 = vld [vmem:[#allocation2 + $0x8] sm:$0xff]
        %v638 = vld [vmem:[#allocation2 + $0x10] sm:$0xff]
        %v639 = vld [vmem:[#allocation2 + $0x18] sm:$0xff]
        %v640 = vld [vmem:[#allocation2 + $0x20] sm:$0xff]
        %v641 = vld [vmem:[#allocation2 + $0x28] sm:$0xff]
        %v642 = vld [vmem:[#allocation2 + $0x30] sm:$0xff]
        %v643 = vld [vmem:[#allocation2 + $0x38] sm:$0xff]
        %v646 = vunpack.c.l.b16 %v620
        %v647 = vunpack.c.l.b16 %v621
        %v648 = vpack.c.b16 %v647, %v646
        %650 = vmatprep.subr.bf16.mxu0 0
        %651 = vmatpush1.bf16.xpose.msra.mxu0 %v648
        %652 = vmatprep.subr.bf16.mxu0 0
        %653 = vmatpush1.bf16.xpose.msra.mxu0 0
        %654 = vmatprep.subr.bf16.mxu0 0
        %655 = vmatpush1.bf16.xpose.msra.mxu0 0
        %656 = vmatprep.subr.bf16.mxu0 0
        %657 = vmatpush1.bf16.xpose.msra.mxu0 0
        %658 = vmatprep.subr.bf16.mxu0 0
        %659 = vmatpush1.bf16.xpose.msra.mxu0 0
        %660 = vmatprep.subr.bf16.mxu0 0
        %661 = vmatpush1.bf16.xpose.msra.mxu0 0
        %662 = vmatprep.subr.bf16.mxu0 0
        %663 = vmatpush1.bf16.xpose.msra.mxu0 0
        %664 = vmatprep.subr.bf16.mxu0 0
        %665 = vmatpush1.bf16.xpose.msra.mxu0 0
        %666 = vmatprep.subr.bf16.mxu0 0
        %667 = vmatpush1.bf16.xpose.msra.mxu0 0
        %668 = vmatprep.subr.bf16.mxu0 0
        %669 = vmatpush1.bf16.xpose.msra.mxu0 0
        %670 = vmatprep.subr.bf16.mxu0 0
        %671 = vmatpush1.bf16.xpose.msra.mxu0 0
        %672 = vmatprep.subr.bf16.mxu0 0
        %673 = vmatpush1.bf16.xpose.msra.mxu0 0
        %674 = vmatprep.subr.bf16.mxu0 0
        %675 = vmatpush1.bf16.xpose.msra.mxu0 0
        %676 = vmatprep.subr.bf16.mxu0 0
        %677 = vmatpush1.bf16.xpose.msra.mxu0 0
        %678 = vmatprep.subr.bf16.mxu0 0
        %679 = vmatpush1.bf16.xpose.msra.mxu0 0
        %680 = vmatprep.subr.bf16.mxu0 0
        %681 = vmatpush1.bf16.xpose.msra.mxu0 0
        %682 = vmatprep.mubr.bf16.mxu0 0
        %683 = vmatmul.mubr.bf16.gmra.mrb[0].mxu0 %v636
        %v684 = vpop.f32.mrb[0].mxu0
        %v685 = vadd.f32 0.0, %v684
        %v686 = vpop.f32.mrb[0].mxu0
        %v687 = vpop.f32.mrb[0].mxu0
        %v688 = vadd.f32 0.0, %v687
        %v689 = vpop.f32.mrb[0].mxu0
        %690 = vmatprep.mubr.bf16.mxu0 0
        %691 = vmatmul.mubr.bf16.gmra.mrb[0].mxu0 %v637
        %v692 = vpop.f32.mrb[0].mxu0
        %v693 = vadd.f32 0.0, %v692
        %v694 = vpop.f32.mrb[0].mxu0
        %v695 = vpop.f32.mrb[0].mxu0
        %v696 = vadd.f32 0.0, %v695
        %v697 = vpop.f32.mrb[0].mxu0
        %698 = vdwg.mxu0
        %v701 = vunpack.c.l.b16 %v622
        %v702 = vunpack.c.l.b16 %v623
        %v703 = vpack.c.b16 %v702, %v701
        %705 = vmatprep.subr.bf16.mxu0 0
        %706 = vmatpush1.bf16.xpose.msra.mxu0 %v703
        %707 = vmatprep.subr.bf16.mxu0 0
        %708 = vmatpush1.bf16.xpose.msra.mxu0 0
        %709 = vmatprep.subr.bf16.mxu0 0
        %710 = vmatpush1.bf16.xpose.msra.mxu0 0
        %711 = vmatprep.subr.bf16.mxu0 0
        %712 = vmatpush1.bf16.xpose.msra.mxu0 0
        %713 = vmatprep.subr.bf16.mxu0 0
        %714 = vmatpush1.bf16.xpose.msra.mxu0 0
        %715 = vmatprep.subr.bf16.mxu0 0
        %716 = vmatpush1.bf16.xpose.msra.mxu0 0
        %717 = vmatprep.subr.bf16.mxu0 0
        %718 = vmatpush1.bf16.xpose.msra.mxu0 0
        %719 = vmatprep.subr.bf16.mxu0 0
        %720 = vmatpush1.bf16.xpose.msra.mxu0 0
        %721 = vmatprep.subr.bf16.mxu0 0
        %722 = vmatpush1.bf16.xpose.msra.mxu0 0
        %723 = vmatprep.subr.bf16.mxu0 0
        %724 = vmatpush1.bf16.xpose.msra.mxu0 0
        %725 = vmatprep.subr.bf16.mxu0 0
        %726 = vmatpush1.bf16.xpose.msra.mxu0 0
        %727 = vmatprep.subr.bf16.mxu0 0
        %728 = vmatpush1.bf16.xpose.msra.mxu0 0
        %729 = vmatprep.subr.bf16.mxu0 0
        %730 = vmatpush1.bf16.xpose.msra.mxu0 0
        %731 = vmatprep.subr.bf16.mxu0 0
        %732 = vmatpush1.bf16.xpose.msra.mxu0 0
        %733 = vmatprep.subr.bf16.mxu0 0
        %734 = vmatpush1.bf16.xpose.msra.mxu0 0
        %735 = vmatprep.subr.bf16.mxu0 0
        %736 = vmatpush1.bf16.xpose.msra.mxu0 0
        %737 = vmatprep.mubr.bf16.mxu0 0
        %738 = vmatmul.mubr.bf16.gmra.mrb[0].mxu0 %v638
        %v739 = vpop.f32.mrb[0].mxu0
        %v740 = vadd.f32 0.0, %v739
        %v741 = vpop.f32.mrb[0].mxu0
        %v742 = vpop.f32.mrb[0].mxu0
        %v743 = vadd.f32 0.0, %v742
        %v744 = vpop.f32.mrb[0].mxu0
        %745 = vmatprep.mubr.bf16.mxu0 0
        %746 = vmatmul.mubr.bf16.gmra.mrb[0].mxu0 %v639
        %v747 = vpop.f32.mrb[0].mxu0
        %v748 = vadd.f32 0.0, %v747
        %v749 = vpop.f32.mrb[0].mxu0
        %v750 = vpop.f32.mrb[0].mxu0
        %v751 = vadd.f32 0.0, %v750
        %v752 = vpop.f32.mrb[0].mxu0
        %753 = vdwg.mxu0
        %v756 = vunpack.c.l.b16 %v624
        %v757 = vunpack.c.l.b16 %v625
        %v758 = vpack.c.b16 %v757, %v756
        %760 = vmatprep.subr.bf16.mxu0 0
        %761 = vmatpush1.bf16.xpose.msra.mxu0 %v758
        %762 = vmatprep.subr.bf16.mxu0 0
        %763 = vmatpush1.bf16.xpose.msra.mxu0 0
        %764 = vmatprep.subr.bf16.mxu0 0
        %765 = vmatpush1.bf16.xpose.msra.mxu0 0
        %766 = vmatprep.subr.bf16.mxu0 0
        %767 = vmatpush1.bf16.xpose.msra.mxu0 0
        %768 = vmatprep.subr.bf16.mxu0 0
        %769 = vmatpush1.bf16.xpose.msra.mxu0 0
        %770 = vmatprep.subr.bf16.mxu0 0
        %771 = vmatpush1.bf16.xpose.msra.mxu0 0
        %772 = vmatprep.subr.bf16.mxu0 0
        %773 = vmatpush1.bf16.xpose.msra.mxu0 0
        %774 = vmatprep.subr.bf16.mxu0 0
        %775 = vmatpush1.bf16.xpose.msra.mxu0 0
        %776 = vmatprep.subr.bf16.mxu0 0
        %777 = vmatpush1.bf16.xpose.msra.mxu0 0
        %778 = vmatprep.subr.bf16.mxu0 0
        %779 = vmatpush1.bf16.xpose.msra.mxu0 0
        %780 = vmatprep.subr.bf16.mxu0 0
        %781 = vmatpush1.bf16.xpose.msra.mxu0 0
        %782 = vmatprep.subr.bf16.mxu0 0
        %783 = vmatpush1.bf16.xpose.msra.mxu0 0
        %784 = vmatprep.subr.bf16.mxu0 0
        %785 = vmatpush1.bf16.xpose.msra.mxu0 0
        %786 = vmatprep.subr.bf16.mxu0 0
        %787 = vmatpush1.bf16.xpose.msra.mxu0 0
        %788 = vmatprep.subr.bf16.mxu0 0
        %789 = vmatpush1.bf16.xpose.msra.mxu0 0
        %790 = vmatprep.subr.bf16.mxu0 0
        %791 = vmatpush1.bf16.xpose.msra.mxu0 0
        %792 = vmatprep.mubr.bf16.mxu0 0
        %793 = vmatmul.mubr.bf16.gmra.mrb[0].mxu0 %v640
        %v794 = vpop.f32.mrb[0].mxu0
        %v795 = vadd.f32 0.0, %v794
        %v796 = vpop.f32.mrb[0].mxu0
        %v797 = vpop.f32.mrb[0].mxu0
        %v798 = vadd.f32 0.0, %v797
        %v799 = vpop.f32.mrb[0].mxu0
        %800 = vmatprep.mubr.bf16.mxu0 0
        %801 = vmatmul.mubr.bf16.gmra.mrb[0].mxu0 %v641
        %v802 = vpop.f32.mrb[0].mxu0
        %v803 = vadd.f32 0.0, %v802
        %v804 = vpop.f32.mrb[0].mxu0
        %v805 = vpop.f32.mrb[0].mxu0
        %v806 = vadd.f32 0.0, %v805
        %v807 = vpop.f32.mrb[0].mxu0
        %808 = vdwg.mxu0
        %v811 = vunpack.c.l.b16 %v626
        %v812 = vunpack.c.l.b16 %v627
        %v813 = vpack.c.b16 %v812, %v811
        %815 = vmatprep.subr.bf16.mxu0 0
        %816 = vmatpush1.bf16.xpose.msra.mxu0 %v813
        %817 = vmatprep.subr.bf16.mxu0 0
        %818 = vmatpush1.bf16.xpose.msra.mxu0 0
        %819 = vmatprep.subr.bf16.mxu0 0
        %820 = vmatpush1.bf16.xpose.msra.mxu0 0
        %821 = vmatprep.subr.bf16.mxu0 0
        %822 = vmatpush1.bf16.xpose.msra.mxu0 0
        %823 = vmatprep.subr.bf16.mxu0 0
        %824 = vmatpush1.bf16.xpose.msra.mxu0 0
        %825 = vmatprep.subr.bf16.mxu0 0
        %826 = vmatpush1.bf16.xpose.msra.mxu0 0
        %827 = vmatprep.subr.bf16.mxu0 0
        %828 = vmatpush1.bf16.xpose.msra.mxu0 0
        %829 = vmatprep.subr.bf16.mxu0 0
        %830 = vmatpush1.bf16.xpose.msra.mxu0 0
        %831 = vmatprep.subr.bf16.mxu0 0
        %832 = vmatpush1.bf16.xpose.msra.mxu0 0
        %833 = vmatprep.subr.bf16.mxu0 0
        %834 = vmatpush1.bf16.xpose.msra.mxu0 0
        %835 = vmatprep.subr.bf16.mxu0 0
        %836 = vmatpush1.bf16.xpose.msra.mxu0 0
        %837 = vmatprep.subr.bf16.mxu0 0
        %838 = vmatpush1.bf16.xpose.msra.mxu0 0
        %839 = vmatprep.subr.bf16.mxu0 0
        %840 = vmatpush1.bf16.xpose.msra.mxu0 0
        %841 = vmatprep.subr.bf16.mxu0 0
        %842 = vmatpush1.bf16.xpose.msra.mxu0 0
        %843 = vmatprep.subr.bf16.mxu0 0
        %844 = vmatpush1.bf16.xpose.msra.mxu0 0
        %845 = vmatprep.subr.bf16.mxu0 0
        %846 = vmatpush1.bf16.xpose.msra.mxu0 0
        %847 = vmatprep.mubr.bf16.mxu0 0
        %848 = vmatmul.mubr.bf16.gmra.mrb[0].mxu0 %v642
        %v849 = vpop.f32.mrb[0].mxu0
        %v850 = vadd.f32 0.0, %v849
        %v851 = vpop.f32.mrb[0].mxu0
        %v852 = vpop.f32.mrb[0].mxu0
        %v853 = vadd.f32 0.0, %v852
        %v854 = vpop.f32.mrb[0].mxu0
        %855 = vmatprep.mubr.bf16.mxu0 0
        %856 = vmatmul.mubr.bf16.gmra.mrb[0].mxu0 %v643
        %v857 = vpop.f32.mrb[0].mxu0
        %v858 = vadd.f32 0.0, %v857
        %v859 = vpop.f32.mrb[0].mxu0
        %v860 = vpop.f32.mrb[0].mxu0
        %v861 = vadd.f32 0.0, %v860
        %v862 = vpop.f32.mrb[0].mxu0
        %863 = vdwg.mxu0
        %v864 = vmul.f32 %v685, %v685
        %v865 = vmul.f32 %v688, %v688
        %v866 = vmul.f32 %v740, %v740
        %v867 = vmul.f32 %v743, %v743
        %v868 = vmul.f32 %v795, %v795
        %v869 = vmul.f32 %v798, %v798
        %v870 = vmul.f32 %v850, %v850
        %v871 = vmul.f32 %v853, %v853
        %v872 = vmul.f32 %v693, %v693
        %v873 = vmul.f32 %v696, %v696
        %v874 = vmul.f32 %v748, %v748
        %v875 = vmul.f32 %v751, %v751
        %v876 = vmul.f32 %v803, %v803
        %v877 = vmul.f32 %v806, %v806
        %v878 = vmul.f32 %v858, %v858
        %v879 = vmul.f32 %v861, %v861
        %v880 = vadd.f32 %v864, %v872
        %v881 = vadd.f32 %v865, %v873
        %v882 = vadd.f32 %v866, %v874
        %v883 = vadd.f32 %v867, %v875
        %v884 = vadd.f32 %v868, %v876
        %v885 = vadd.f32 %v869, %v877
        %v886 = vadd.f32 %v870, %v878
        %v887 = vadd.f32 %v871, %v879
        %v888 = vrsqrt.pop %v880
        %v889 = vmul.f32 %v880, %v888
        %vm890 = vcmp.eq.f32.partialorder %v880, inf
        %v891 = vsel %vm890, %v880, %v889
        %vm892 = vcmp.eq.f32.partialorder %v880, 0.0
        %v893 = vand.u32 %v880, 2147483648
        %v894 = vsel %vm892, %v893, %v891
        %v895 = vrsqrt.pop %v881
        %v896 = vmul.f32 %v881, %v895
        %vm897 = vcmp.eq.f32.partialorder %v881, inf
        %v898 = vsel %vm897, %v881, %v896
        %vm899 = vcmp.eq.f32.partialorder %v881, 0.0
        %v900 = vand.u32 %v881, 2147483648
        %v901 = vsel %vm899, %v900, %v898
        %v902 = vrsqrt.pop %v882
        %v903 = vmul.f32 %v882, %v902
        %vm904 = vcmp.eq.f32.partialorder %v882, inf
        %v905 = vsel %vm904, %v882, %v903
        %vm906 = vcmp.eq.f32.partialorder %v882, 0.0
        %v907 = vand.u32 %v882, 2147483648
        %v908 = vsel %vm906, %v907, %v905
        %v909 = vrsqrt.pop %v883
        %v910 = vmul.f32 %v883, %v909
        %vm911 = vcmp.eq.f32.partialorder %v883, inf
        %v912 = vsel %vm911, %v883, %v910
        %vm913 = vcmp.eq.f32.partialorder %v883, 0.0
        %v914 = vand.u32 %v883, 2147483648
        %v915 = vsel %vm913, %v914, %v912
        %v916 = vrsqrt.pop %v884
        %v917 = vmul.f32 %v884, %v916
        %vm918 = vcmp.eq.f32.partialorder %v884, inf
        %v919 = vsel %vm918, %v884, %v917
        %vm920 = vcmp.eq.f32.partialorder %v884, 0.0
        %v921 = vand.u32 %v884, 2147483648
        %v922 = vsel %vm920, %v921, %v919
        %v923 = vrsqrt.pop %v885
        %v924 = vmul.f32 %v885, %v923
        %vm925 = vcmp.eq.f32.partialorder %v885, inf
        %v926 = vsel %vm925, %v885, %v924
        %vm927 = vcmp.eq.f32.partialorder %v885, 0.0
        %v928 = vand.u32 %v885, 2147483648
        %v929 = vsel %vm927, %v928, %v926
        %v930 = vrsqrt.pop %v886
        %v931 = vmul.f32 %v886, %v930
        %vm932 = vcmp.eq.f32.partialorder %v886, inf
        %v933 = vsel %vm932, %v886, %v931
        %vm934 = vcmp.eq.f32.partialorder %v886, 0.0
        %v935 = vand.u32 %v886, 2147483648
        %v936 = vsel %vm934, %v935, %v933
        %v937 = vrsqrt.pop %v887
        %v938 = vmul.f32 %v887, %v937
        %vm939 = vcmp.eq.f32.partialorder %v887, inf
        %v940 = vsel %vm939, %v887, %v938
        %vm941 = vcmp.eq.f32.partialorder %v887, 0.0
        %v942 = vand.u32 %v887, 2147483648
        %v943 = vsel %vm941, %v942, %v940
        %v944 = vmul.f32 %v894, 0.015625
        %v945 = vmul.f32 %v901, 0.015625
        %v946 = vmul.f32 %v908, 0.015625
        %v947 = vmul.f32 %v915, 0.015625
        %v948 = vmul.f32 %v922, 0.015625
        %v949 = vmul.f32 %v929, 0.015625
        %v950 = vmul.f32 %v936, 0.015625
        %v951 = vmul.f32 %v943, 0.015625
        %v952 = vlaneseq
        %v953 = vand.u32 %v952, 127
        %s954 = smul.u32 %s34, 16
        %v955 = vstv %s954
        %v956 = vadd.s32 %v953, %v955
        %vm957 = vcmp.lt.s32.totalorder %v956, 4
        %v958 = vsel %vm957, %v944, -1e+30
        %v959 = vsel %vm957, %v945, -1e+30
        %v960 = vsel %vm957, %v946, -1e+30
        %v961 = vsel %vm957, %v947, -1e+30
        %v962 = vsel %vm957, %v948, -1e+30
        %v963 = vsel %vm957, %v949, -1e+30
        %v964 = vsel %vm957, %v950, -1e+30
        %v965 = vsel %vm957, %v951, -1e+30
        %v966 = vld [vmem:[#allocation3] sm:$0xff]
        %v967 = vld [vmem:[#allocation3 + $0x8] sm:$0xff]
        %v968 = vld [vmem:[#allocation3 + $0x10] sm:$0xff]
        %v969 = vld [vmem:[#allocation3 + $0x18] sm:$0xff]
        %v970 = vld [vmem:[#allocation3 + $0x20] sm:$0xff]
        %v971 = vld [vmem:[#allocation3 + $0x28] sm:$0xff]
        %v972 = vld [vmem:[#allocation3 + $0x30] sm:$0xff]
        %v973 = vld [vmem:[#allocation3 + $0x38] sm:$0xff]
        %vm974 = vcmask 130048
        %v975 = vsel %vm974, %v958, -inf
        %976 = vmax.xlane.f32.xlu0 %v975
        %v977 = vpop.xlane.xlu0 %976
        %v978 = vsel %vm974, %v959, -inf
        %979 = vmax.xlane.f32.xlu0 %v978
        %v980 = vpop.xlane.xlu0 %979
        %v981 = vsel %vm974, %v960, -inf
        %982 = vmax.xlane.f32.xlu0 %v981
        %v983 = vpop.xlane.xlu0 %982
        %v984 = vsel %vm974, %v961, -inf
        %985 = vmax.xlane.f32.xlu0 %v984
        %v986 = vpop.xlane.xlu0 %985
        %v987 = vsel %vm974, %v962, -inf
        %988 = vmax.xlane.f32.xlu0 %v987
        %v989 = vpop.xlane.xlu0 %988
        %v990 = vsel %vm974, %v963, -inf
        %991 = vmax.xlane.f32.xlu0 %v990
        %v992 = vpop.xlane.xlu0 %991
        %v993 = vsel %vm974, %v964, -inf
        %994 = vmax.xlane.f32.xlu0 %v993
        %v995 = vpop.xlane.xlu0 %994
        %v996 = vsel %vm974, %v965, -inf
        %997 = vmax.xlane.f32.xlu0 %v996
        %v998 = vpop.xlane.xlu0 %997
        %v999 = vmax.f32 %v966, %v977
        %v1000 = vmax.f32 %v967, %v980
        %v1001 = vmax.f32 %v968, %v983
        %v1002 = vmax.f32 %v969, %v986
        %v1003 = vmax.f32 %v970, %v989
        %v1004 = vmax.f32 %v971, %v992
        %v1005 = vmax.f32 %v972, %v995
        %v1006 = vmax.f32 %v973, %v998
        %v1007 = vsub.f32 %v966, %v999
        %v1008 = vsub.f32 %v967, %v1000
        %v1009 = vsub.f32 %v968, %v1001
        %v1010 = vsub.f32 %v969, %v1002
        %v1011 = vsub.f32 %v970, %v1003
        %v1012 = vsub.f32 %v971, %v1004
        %v1013 = vsub.f32 %v972, %v1005
        %v1014 = vsub.f32 %v973, %v1006
        %v1015 = vmul.f32 %v1007, 1.442695
        %v1016 = vpow.pop %v1015
        %v1017 = vmul.f32 %v1008, 1.442695
        %v1018 = vpow.pop %v1017
        %v1019 = vmul.f32 %v1009, 1.442695
        %v1020 = vpow.pop %v1019
        %v1021 = vmul.f32 %v1010, 1.442695
        %v1022 = vpow.pop %v1021
        %v1023 = vmul.f32 %v1011, 1.442695
        %v1024 = vpow.pop %v1023
        %v1025 = vmul.f32 %v1012, 1.442695
        %v1026 = vpow.pop %v1025
        %v1027 = vmul.f32 %v1013, 1.442695
        %v1028 = vpow.pop %v1027
        %v1029 = vmul.f32 %v1014, 1.442695
        %v1030 = vpow.pop %v1029
        %1032 = vset.pattern.permute.xlu0 0
        %1033 = vperm.xlu0 %1032, %v999
        %v1034 = vpop.permute.xlu0 %1033
        %1037 = vset.pattern.permute.xlu0 0
        %1038 = vperm.xlu0 %1037, %v1000
        %v1039 = vpop.permute.xlu0 %1038
        %1042 = vset.pattern.permute.xlu0 0
        %1043 = vperm.xlu0 %1042, %v1001
        %v1044 = vpop.permute.xlu0 %1043
        %1047 = vset.pattern.permute.xlu0 0
        %1048 = vperm.xlu0 %1047, %v1002
        %v1049 = vpop.permute.xlu0 %1048
        %1052 = vset.pattern.permute.xlu0 0
        %1053 = vperm.xlu0 %1052, %v1003
        %v1054 = vpop.permute.xlu0 %1053
        %1057 = vset.pattern.permute.xlu0 0
        %1058 = vperm.xlu0 %1057, %v1004
        %v1059 = vpop.permute.xlu0 %1058
        %1062 = vset.pattern.permute.xlu0 0
        %1063 = vperm.xlu0 %1062, %v1005
        %v1064 = vpop.permute.xlu0 %1063
        %1067 = vset.pattern.permute.xlu0 0
        %1068 = vperm.xlu0 %1067, %v1006
        %v1069 = vpop.permute.xlu0 %1068
        %v1071 = vsub.f32 %v958, %v1034
        %v1072 = vsub.f32 %v959, %v1039
        %v1073 = vsub.f32 %v960, %v1044
        %v1074 = vsub.f32 %v961, %v1049
        %v1075 = vsub.f32 %v962, %v1054
        %v1076 = vsub.f32 %v963, %v1059
        %v1077 = vsub.f32 %v964, %v1064
        %v1078 = vsub.f32 %v965, %v1069
        %v1079 = vmul.f32 %v1071, 1.442695
        %v1080 = vpow.pop %v1079
        %v1081 = vmul.f32 %v1072, 1.442695
        %v1082 = vpow.pop %v1081
        %v1083 = vmul.f32 %v1073, 1.442695
        %v1084 = vpow.pop %v1083
        %v1085 = vmul.f32 %v1074, 1.442695
        %v1086 = vpow.pop %v1085
        %v1087 = vmul.f32 %v1075, 1.442695
        %v1088 = vpow.pop %v1087
        %v1089 = vmul.f32 %v1076, 1.442695
        %v1090 = vpow.pop %v1089
        %v1091 = vmul.f32 %v1077, 1.442695
        %v1092 = vpow.pop %v1091
        %v1093 = vmul.f32 %v1078, 1.442695
        %v1094 = vpow.pop %v1093
        %v1095 = vld [vmem:[#allocation4] sm:$0xff]
        %v1096 = vld [vmem:[#allocation4 + $0x8] sm:$0xff]
        %v1097 = vld [vmem:[#allocation4 + $0x10] sm:$0xff]
        %v1098 = vld [vmem:[#allocation4 + $0x18] sm:$0xff]
        %v1099 = vld [vmem:[#allocation4 + $0x20] sm:$0xff]
        %v1100 = vld [vmem:[#allocation4 + $0x28] sm:$0xff]
        %v1101 = vld [vmem:[#allocation4 + $0x30] sm:$0xff]
        %v1102 = vld [vmem:[#allocation4 + $0x38] sm:$0xff]
        %v1103 = vmul.f32 %v1016, %v1095
        %v1104 = vmul.f32 %v1018, %v1096
        %v1105 = vmul.f32 %v1020, %v1097
        %v1106 = vmul.f32 %v1022, %v1098
        %v1107 = vmul.f32 %v1024, %v1099
        %v1108 = vmul.f32 %v1026, %v1100
        %v1109 = vmul.f32 %v1028, %v1101
        %v1110 = vmul.f32 %v1030, %v1102
        %v1111 = vsel %vm974, %v1080, 0.0
        %1112 = vadd.xlane.f32.xlu0 %v1111
        %v1113 = vpop.xlane.xlu0 %1112
        %v1114 = vsel %vm974, %v1082, 0.0
        %1115 = vadd.xlane.f32.xlu0 %v1114
        %v1116 = vpop.xlane.xlu0 %1115
        %v1117 = vsel %vm974, %v1084, 0.0
        %1118 = vadd.xlane.f32.xlu0 %v1117
        %v1119 = vpop.xlane.xlu0 %1118
        %v1120 = vsel %vm974, %v1086, 0.0
        %1121 = vadd.xlane.f32.xlu0 %v1120
        %v1122 = vpop.xlane.xlu0 %1121
        %v1123 = vsel %vm974, %v1088, 0.0
        %1124 = vadd.xlane.f32.xlu0 %v1123
        %v1125 = vpop.xlane.xlu0 %1124
        %v1126 = vsel %vm974, %v1090, 0.0
        %1127 = vadd.xlane.f32.xlu0 %v1126
        %v1128 = vpop.xlane.xlu0 %1127
        %v1129 = vsel %vm974, %v1092, 0.0
        %1130 = vadd.xlane.f32.xlu0 %v1129
        %v1131 = vpop.xlane.xlu0 %1130
        %v1132 = vsel %vm974, %v1094, 0.0
        %1133 = vadd.xlane.f32.xlu0 %v1132
        %v1134 = vpop.xlane.xlu0 %1133
        %v1135 = vadd.f32 %v1103, %v1113
        %v1136 = vadd.f32 %v1104, %v1116
        %v1137 = vadd.f32 %v1105, %v1119
        %v1138 = vadd.f32 %v1106, %v1122
        %v1139 = vadd.f32 %v1107, %v1125
        %v1140 = vadd.f32 %v1108, %v1128
        %v1141 = vadd.f32 %v1109, %v1131
        %v1142 = vadd.f32 %v1110, %v1134
        %vm1143 = vcmask 7168
        %1144 = vst.msk [vmem:[#allocation4] sm:$0xff] %vm1143, %v1135
        %1145 = vst.msk [vmem:[#allocation4 + $0x8] sm:$0xff] %vm1143, %v1136
        %1146 = vst.msk [vmem:[#allocation4 + $0x10] sm:$0xff] %vm1143, %v1137
        %1147 = vst.msk [vmem:[#allocation4 + $0x18] sm:$0xff] %vm1143, %v1138
        %1148 = vst.msk [vmem:[#allocation4 + $0x20] sm:$0xff] %vm1143, %v1139
        %1149 = vst.msk [vmem:[#allocation4 + $0x28] sm:$0xff] %vm1143, %v1140
        %1150 = vst.msk [vmem:[#allocation4 + $0x30] sm:$0xff] %vm1143, %v1141
        %1151 = vst.msk [vmem:[#allocation4 + $0x38] sm:$0xff] %vm1143, %v1142
        %v1152 = vld [vmem:[#allocation5] sm:$0xff]
        %v1153 = vld [vmem:[#allocation5 + $0x8] sm:$0xff]
        %v1154 = vld [vmem:[#allocation5 + $0x10] sm:$0xff]
        %v1155 = vld [vmem:[#allocation5 + $0x18] sm:$0xff]
        %v1156 = vld [vmem:[#allocation5 + $0x20] sm:$0xff]
        %v1157 = vld [vmem:[#allocation5 + $0x28] sm:$0xff]
        %v1158 = vld [vmem:[#allocation5 + $0x30] sm:$0xff]
        %v1159 = vld [vmem:[#allocation5 + $0x38] sm:$0xff]
        %1161 = vset.pattern.permute.xlu0 0
        %1162 = vperm.xlu0 %1161, %v1016
        %v1163 = vpop.permute.xlu0 %1162
        %1166 = vset.pattern.permute.xlu0 0
        %1167 = vperm.xlu0 %1166, %v1018
        %v1168 = vpop.permute.xlu0 %1167
        %1171 = vset.pattern.permute.xlu0 0
        %1172 = vperm.xlu0 %1171, %v1020
        %v1173 = vpop.permute.xlu0 %1172
        %1176 = vset.pattern.permute.xlu0 0
        %1177 = vperm.xlu0 %1176, %v1022
        %v1178 = vpop.permute.xlu0 %1177
        %1181 = vset.pattern.permute.xlu0 0
        %1182 = vperm.xlu0 %1181, %v1024
        %v1183 = vpop.permute.xlu0 %1182
        %1186 = vset.pattern.permute.xlu0 0
        %1187 = vperm.xlu0 %1186, %v1026
        %v1188 = vpop.permute.xlu0 %1187
        %1191 = vset.pattern.permute.xlu0 0
        %1192 = vperm.xlu0 %1191, %v1028
        %v1193 = vpop.permute.xlu0 %1192
        %1196 = vset.pattern.permute.xlu0 0
        %1197 = vperm.xlu0 %1196, %v1030
        %v1198 = vpop.permute.xlu0 %1197
        %v1200 = vmul.f32 %v1163, %v1152
        %v1201 = vmul.f32 %v1168, %v1153
        %v1202 = vmul.f32 %v1173, %v1154
        %v1203 = vmul.f32 %v1178, %v1155
        %v1204 = vmul.f32 %v1183, %v1156
        %v1205 = vmul.f32 %v1188, %v1157
        %v1206 = vmul.f32 %v1193, %v1158
        %v1207 = vmul.f32 %v1198, %v1159
        %v1208 = vpack.c.bf16 %v1082, %v1080
        %v1209 = vpack.c.bf16 %v1086, %v1084
        %v1210 = vpack.c.bf16 %v1090, %v1088
        %v1211 = vpack.c.bf16 %v1094, %v1092
        %v1214 = vunpack.c.l.b16 %v628
        %v1215 = vunpack.c.l.b16 %v629
        %v1216 = vpack.c.b16 %v1215, %v1214
        %v1219 = vsel %vm974, %v1208, 0
        %1221 = vmatprep.subr.bf16.mxu0 0
        %1222 = vmatpush1.bf16.msra.mxu0 %v1216
        %1223 = vmatprep.subr.bf16.mxu0 0
        %1224 = vmatpush1.bf16.msra.mxu0 0
        %1225 = vmatprep.subr.bf16.mxu0 0
        %1226 = vmatpush1.bf16.msra.mxu0 0
        %1227 = vmatprep.subr.bf16.mxu0 0
        %1228 = vmatpush1.bf16.msra.mxu0 0
        %1229 = vmatprep.subr.bf16.mxu0 0
        %1230 = vmatpush1.bf16.msra.mxu0 0
        %1231 = vmatprep.subr.bf16.mxu0 0
        %1232 = vmatpush1.bf16.msra.mxu0 0
        %1233 = vmatprep.subr.bf16.mxu0 0
        %1234 = vmatpush1.bf16.msra.mxu0 0
        %1235 = vmatprep.subr.bf16.mxu0 0
        %1236 = vmatpush1.bf16.msra.mxu0 0
        %1237 = vmatprep.subr.bf16.mxu0 0
        %1238 = vmatpush1.bf16.msra.mxu0 0
        %1239 = vmatprep.subr.bf16.mxu0 0
        %1240 = vmatpush1.bf16.msra.mxu0 0
        %1241 = vmatprep.subr.bf16.mxu0 0
        %1242 = vmatpush1.bf16.msra.mxu0 0
        %1243 = vmatprep.subr.bf16.mxu0 0
        %1244 = vmatpush1.bf16.msra.mxu0 0
        %1245 = vmatprep.subr.bf16.mxu0 0
        %1246 = vmatpush1.bf16.msra.mxu0 0
        %1247 = vmatprep.subr.bf16.mxu0 0
        %1248 = vmatpush1.bf16.msra.mxu0 0
        %1249 = vmatprep.subr.bf16.mxu0 0
        %1250 = vmatpush1.bf16.msra.mxu0 0
        %1251 = vmatprep.subr.bf16.mxu0 0
        %1252 = vmatpush1.bf16.msra.mxu0 0
        %1253 = vmatprep.mubr.bf16.mxu0 0
        %1254 = vmatmul.mubr.bf16.gmra.mrb[0].mxu0 %v1219
        %v1255 = vpop.f32.mrb[0].mxu0
        %v1256 = vadd.f32 0.0, %v1255
        %v1257 = vpop.f32.mrb[0].mxu0
        %v1258 = vpop.f32.mrb[0].mxu0
        %v1259 = vadd.f32 0.0, %v1258
        %v1260 = vpop.f32.mrb[0].mxu0
        %1261 = vdwg.mxu0
        %v1264 = vunpack.c.l.b16 %v630
        %v1265 = vunpack.c.l.b16 %v631
        %v1266 = vpack.c.b16 %v1265, %v1264
        %v1269 = vsel %vm974, %v1209, 0
        %1271 = vmatprep.subr.bf16.mxu0 0
        %1272 = vmatpush1.bf16.msra.mxu0 %v1266
        %1273 = vmatprep.subr.bf16.mxu0 0
        %1274 = vmatpush1.bf16.msra.mxu0 0
        %1275 = vmatprep.subr.bf16.mxu0 0
        %1276 = vmatpush1.bf16.msra.mxu0 0
        %1277 = vmatprep.subr.bf16.mxu0 0
        %1278 = vmatpush1.bf16.msra.mxu0 0
        %1279 = vmatprep.subr.bf16.mxu0 0
        %1280 = vmatpush1.bf16.msra.mxu0 0
        %1281 = vmatprep.subr.bf16.mxu0 0
        %1282 = vmatpush1.bf16.msra.mxu0 0
        %1283 = vmatprep.subr.bf16.mxu0 0
        %1284 = vmatpush1.bf16.msra.mxu0 0
        %1285 = vmatprep.subr.bf16.mxu0 0
        %1286 = vmatpush1.bf16.msra.mxu0 0
        %1287 = vmatprep.subr.bf16.mxu0 0
        %1288 = vmatpush1.bf16.msra.mxu0 0
        %1289 = vmatprep.subr.bf16.mxu0 0
        %1290 = vmatpush1.bf16.msra.mxu0 0
        %1291 = vmatprep.subr.bf16.mxu0 0
        %1292 = vmatpush1.bf16.msra.mxu0 0
        %1293 = vmatprep.subr.bf16.mxu0 0
        %1294 = vmatpush1.bf16.msra.mxu0 0
        %1295 = vmatprep.subr.bf16.mxu0 0
        %1296 = vmatpush1.bf16.msra.mxu0 0
        %1297 = vmatprep.subr.bf16.mxu0 0
        %1298 = vmatpush1.bf16.msra.mxu0 0
        %1299 = vmatprep.subr.bf16.mxu0 0
        %1300 = vmatpush1.bf16.msra.mxu0 0
        %1301 = vmatprep.subr.bf16.mxu0 0
        %1302 = vmatpush1.bf16.msra.mxu0 0
        %1303 = vmatprep.mubr.bf16.mxu0 0
        %1304 = vmatmul.mubr.bf16.gmra.mrb[0].mxu0 %v1269
        %v1305 = vpop.f32.mrb[0].mxu0
        %v1306 = vadd.f32 0.0, %v1305
        %v1307 = vpop.f32.mrb[0].mxu0
        %v1308 = vpop.f32.mrb[0].mxu0
        %v1309 = vadd.f32 0.0, %v1308
        %v1310 = vpop.f32.mrb[0].mxu0
        %1311 = vdwg.mxu0
        %v1314 = vunpack.c.l.b16 %v632
        %v1315 = vunpack.c.l.b16 %v633
        %v1316 = vpack.c.b16 %v1315, %v1314
        %v1319 = vsel %vm974, %v1210, 0
        %1321 = vmatprep.subr.bf16.mxu0 0
        %1322 = vmatpush1.bf16.msra.mxu0 %v1316
        %1323 = vmatprep.subr.bf16.mxu0 0
        %1324 = vmatpush1.bf16.msra.mxu0 0
        %1325 = vmatprep.subr.bf16.mxu0 0
        %1326 = vmatpush1.bf16.msra.mxu0 0
        %1327 = vmatprep.subr.bf16.mxu0 0
        %1328 = vmatpush1.bf16.msra.mxu0 0
        %1329 = vmatprep.subr.bf16.mxu0 0
        %1330 = vmatpush1.bf16.msra.mxu0 0
        %1331 = vmatprep.subr.bf16.mxu0 0
        %1332 = vmatpush1.bf16.msra.mxu0 0
        %1333 = vmatprep.subr.bf16.mxu0 0
        %1334 = vmatpush1.bf16.msra.mxu0 0
        %1335 = vmatprep.subr.bf16.mxu0 0
        %1336 = vmatpush1.bf16.msra.mxu0 0
        %1337 = vmatprep.subr.bf16.mxu0 0
        %1338 = vmatpush1.bf16.msra.mxu0 0
        %1339 = vmatprep.subr.bf16.mxu0 0
        %1340 = vmatpush1.bf16.msra.mxu0 0
        %1341 = vmatprep.subr.bf16.mxu0 0
        %1342 = vmatpush1.bf16.msra.mxu0 0
        %1343 = vmatprep.subr.bf16.mxu0 0
        %1344 = vmatpush1.bf16.msra.mxu0 0
        %1345 = vmatprep.subr.bf16.mxu0 0
        %1346 = vmatpush1.bf16.msra.mxu0 0
        %1347 = vmatprep.subr.bf16.mxu0 0
        %1348 = vmatpush1.bf16.msra.mxu0 0
        %1349 = vmatprep.subr.bf16.mxu0 0
        %1350 = vmatpush1.bf16.msra.mxu0 0
        %1351 = vmatprep.subr.bf16.mxu0 0
        %1352 = vmatpush1.bf16.msra.mxu0 0
        %1353 = vmatprep.mubr.bf16.mxu0 0
        %1354 = vmatmul.mubr.bf16.gmra.mrb[0].mxu0 %v1319
        %v1355 = vpop.f32.mrb[0].mxu0
        %v1356 = vadd.f32 0.0, %v1355
        %v1357 = vpop.f32.mrb[0].mxu0
        %v1358 = vpop.f32.mrb[0].mxu0
        %v1359 = vadd.f32 0.0, %v1358
        %v1360 = vpop.f32.mrb[0].mxu0
        %1361 = vdwg.mxu0
        %v1364 = vunpack.c.l.b16 %v634
        %v1365 = vunpack.c.l.b16 %v635
        %v1366 = vpack.c.b16 %v1365, %v1364
        %v1369 = vsel %vm974, %v1211, 0
        %1371 = vmatprep.subr.bf16.mxu0 0
        %1372 = vmatpush1.bf16.msra.mxu0 %v1366
        %1373 = vmatprep.subr.bf16.mxu0 0
        %1374 = vmatpush1.bf16.msra.mxu0 0
        %1375 = vmatprep.subr.bf16.mxu0 0
        %1376 = vmatpush1.bf16.msra.mxu0 0
        %1377 = vmatprep.subr.bf16.mxu0 0
        %1378 = vmatpush1.bf16.msra.mxu0 0
        %1379 = vmatprep.subr.bf16.mxu0 0
        %1380 = vmatpush1.bf16.msra.mxu0 0
        %1381 = vmatprep.subr.bf16.mxu0 0
        %1382 = vmatpush1.bf16.msra.mxu0 0
        %1383 = vmatprep.subr.bf16.mxu0 0
        %1384 = vmatpush1.bf16.msra.mxu0 0
        %1385 = vmatprep.subr.bf16.mxu0 0
        %1386 = vmatpush1.bf16.msra.mxu0 0
        %1387 = vmatprep.subr.bf16.mxu0 0
        %1388 = vmatpush1.bf16.msra.mxu0 0
        %1389 = vmatprep.subr.bf16.mxu0 0
        %1390 = vmatpush1.bf16.msra.mxu0 0
        %1391 = vmatprep.subr.bf16.mxu0 0
        %1392 = vmatpush1.bf16.msra.mxu0 0
        %1393 = vmatprep.subr.bf16.mxu0 0
        %1394 = vmatpush1.bf16.msra.mxu0 0
        %1395 = vmatprep.subr.bf16.mxu0 0
        %1396 = vmatpush1.bf16.msra.mxu0 0
        %1397 = vmatprep.subr.bf16.mxu0 0
        %1398 = vmatpush1.bf16.msra.mxu0 0
        %1399 = vmatprep.subr.bf16.mxu0 0
        %1400 = vmatpush1.bf16.msra.mxu0 0
        %1401 = vmatprep.subr.bf16.mxu0 0
        %1402 = vmatpush1.bf16.msra.mxu0 0
        %1403 = vmatprep.mubr.bf16.mxu0 0
        %1404 = vmatmul.mubr.bf16.gmra.mrb[0].mxu0 %v1369
        %v1405 = vpop.f32.mrb[0].mxu0
        %v1406 = vadd.f32 0.0, %v1405
        %v1407 = vpop.f32.mrb[0].mxu0
        %v1408 = vpop.f32.mrb[0].mxu0
        %v1409 = vadd.f32 0.0, %v1408
        %v1410 = vpop.f32.mrb[0].mxu0
        %1411 = vdwg.mxu0
        %v1412 = vadd.f32 %v1200, %v1256
        %v1413 = vadd.f32 %v1201, %v1259
        %v1414 = vadd.f32 %v1202, %v1306
        %v1415 = vadd.f32 %v1203, %v1309
        %v1416 = vadd.f32 %v1204, %v1356
        %v1417 = vadd.f32 %v1205, %v1359
        %v1418 = vadd.f32 %v1206, %v1406
        %v1419 = vadd.f32 %v1207, %v1409
        %1420 = vst [vmem:[#allocation5] sm:$0xff] %v1412
        %1421 = vst [vmem:[#allocation5 + $0x8] sm:$0xff] %v1413
        %1422 = vst [vmem:[#allocation5 + $0x10] sm:$0xff] %v1414
        %1423 = vst [vmem:[#allocation5 + $0x18] sm:$0xff] %v1415
        %1424 = vst [vmem:[#allocation5 + $0x20] sm:$0xff] %v1416
        %1425 = vst [vmem:[#allocation5 + $0x28] sm:$0xff] %v1417
        %1426 = vst [vmem:[#allocation5 + $0x30] sm:$0xff] %v1418
        %1427 = vst [vmem:[#allocation5 + $0x38] sm:$0xff] %v1419
        %1428 = vst.msk [vmem:[#allocation3] sm:$0xff] %vm1143, %v999
        %1429 = vst.msk [vmem:[#allocation3 + $0x8] sm:$0xff] %vm1143, %v1000
        %1430 = vst.msk [vmem:[#allocation3 + $0x10] sm:$0xff] %vm1143, %v1001
        %1431 = vst.msk [vmem:[#allocation3 + $0x18] sm:$0xff] %vm1143, %v1002
        %1432 = vst.msk [vmem:[#allocation3 + $0x20] sm:$0xff] %vm1143, %v1003
        %1433 = vst.msk [vmem:[#allocation3 + $0x28] sm:$0xff] %vm1143, %v1004
        %1434 = vst.msk [vmem:[#allocation3 + $0x30] sm:$0xff] %vm1143, %v1005
        %1435 = vst.msk [vmem:[#allocation3 + $0x38] sm:$0xff] %vm1143, %v1006
        // Predicated region
        $region57: #{tpu_custom_call.1} parent=35 // pred_check
          %p1436 = pneg %p374
        $region58: #{tpu_custom_call.1} parent=35 // pred_check_branch
          %1438 = sbr.rel (%p1436) target = $region60
        $region59: #{tpu_custom_call.1} parent=35 // pred_region
          %v1439 = vld [vmem:[#allocation5] sm:$0xff]
          %v1440 = vld [vmem:[#allocation5 + $0x8] sm:$0xff]
          %v1441 = vld [vmem:[#allocation5 + $0x10] sm:$0xff]
          %v1442 = vld [vmem:[#allocation5 + $0x18] sm:$0xff]
          %v1443 = vld [vmem:[#allocation5 + $0x20] sm:$0xff]
          %v1444 = vld [vmem:[#allocation5 + $0x28] sm:$0xff]
          %v1445 = vld [vmem:[#allocation5 + $0x30] sm:$0xff]
          %v1446 = vld [vmem:[#allocation5 + $0x38] sm:$0xff]
          %v1447 = vld [vmem:[#allocation4] sm:$0xff]
          %v1448 = vld [vmem:[#allocation4 + $0x8] sm:$0xff]
          %v1449 = vld [vmem:[#allocation4 + $0x10] sm:$0xff]
          %v1450 = vld [vmem:[#allocation4 + $0x18] sm:$0xff]
          %v1451 = vld [vmem:[#allocation4 + $0x20] sm:$0xff]
          %v1452 = vld [vmem:[#allocation4 + $0x28] sm:$0xff]
          %v1453 = vld [vmem:[#allocation4 + $0x30] sm:$0xff]
          %v1454 = vld [vmem:[#allocation4 + $0x38] sm:$0xff]
          %v1455 = vrcp.pop %v1447
          %v1456 = vrcp.pop %v1448
          %v1457 = vrcp.pop %v1449
          %v1458 = vrcp.pop %v1450
          %v1459 = vrcp.pop %v1451
          %v1460 = vrcp.pop %v1452
          %v1461 = vrcp.pop %v1453
          %v1462 = vrcp.pop %v1454
          %1464 = vset.pattern.permute.xlu0 0
          %1465 = vperm.xlu0 %1464, %v1455
          %v1466 = vpop.permute.xlu0 %1465
          %1469 = vset.pattern.permute.xlu0 0
          %1470 = vperm.xlu0 %1469, %v1456
          %v1471 = vpop.permute.xlu0 %1470
          %1474 = vset.pattern.permute.xlu0 0
          %1475 = vperm.xlu0 %1474, %v1457
          %v1476 = vpop.permute.xlu0 %1475
          %1479 = vset.pattern.permute.xlu0 0
          %1480 = vperm.xlu0 %1479, %v1458
          %v1481 = vpop.permute.xlu0 %1480
          %1484 = vset.pattern.permute.xlu0 0
          %1485 = vperm.xlu0 %1484, %v1459
          %v1486 = vpop.permute.xlu0 %1485
          %1489 = vset.pattern.permute.xlu0 0
          %1490 = vperm.xlu0 %1489, %v1460
          %v1491 = vpop.permute.xlu0 %1490
          %1494 = vset.pattern.permute.xlu0 0
          %1495 = vperm.xlu0 %1494, %v1461
          %v1496 = vpop.permute.xlu0 %1495
          %1499 = vset.pattern.permute.xlu0 0
          %1500 = vperm.xlu0 %1499, %v1462
          %v1501 = vpop.permute.xlu0 %1500
          %v1503 = vmul.f32 %v1439, %v1466
          %v1504 = vmul.f32 %v1440, %v1471
          %v1505 = vmul.f32 %v1441, %v1476
          %v1506 = vmul.f32 %v1442, %v1481
          %v1507 = vmul.f32 %v1443, %v1486
          %v1508 = vmul.f32 %v1444, %v1491
          %v1509 = vmul.f32 %v1445, %v1496
          %v1510 = vmul.f32 %v1446, %v1501
          %1511 = vst [vmem:[%s364] sm:$0xff] %v1503
          %1512 = vst [vmem:[%s364 + $0x8] sm:$0xff] %v1504
          %1513 = vst [vmem:[%s364 + $0x10] sm:$0xff] %v1505
          %1514 = vst [vmem:[%s364 + $0x18] sm:$0xff] %v1506
          %1515 = vst [vmem:[%s364 + $0x20] sm:$0xff] %v1507
          %1516 = vst [vmem:[%s364 + $0x28] sm:$0xff] %v1508
          %1517 = vst [vmem:[%s364 + $0x30] sm:$0xff] %v1509
          %1518 = vst [vmem:[%s364 + $0x38] sm:$0xff] %v1510
        $region60: #{tpu_custom_call.1} parent=35 // pred_fallthru
          _
        %s1519 = sand.u32 %s174, 1
        %s1520 = scalar_lea.sflag [#allocation8], %s1519
        %s1521 = sand.u32 %s174, 1
        %s1522 = smul.addr %s1521, 64
        %s1523 = scalar_lea.vmem [#allocation14], %s1522
        // Predicated region
        $region61: #{tpu_custom_call.1} parent=35 // pred_check
          %p1524 = pneg %p184
        $region62: #{tpu_custom_call.1} parent=35 // pred_check_branch
          %1526 = sbr.rel (%p1524) target = $region64
        $region63: #{tpu_custom_call.1} parent=35 // pred_region
          %s1527 = smul.u32 4, %s32
          %s1528 = smul.u32 2, %s33
          %s1530 = ssub.s32 1024, 1024
          %1531 = vsyncadd %s1520, %s1530
          %s1532 = smul.addr %s1527, 2
          %s1533 = sadd.s32 %s1528, %s1532
          %s1534 = smul.addr %s31, 8
          %s1535 = sadd.s32 %s1533, %s1534
          %s1536 = smul.addr %s1535, 128
          %s1537 = scalar_lea.hbm %s4, %s1536
          %s1538 = sshll.u32 %s1523, 4
          %s1539 = int_to_ptr.vmem [resolvable:$true] %s1538
          %1544 = dma.vmem_to_hbm [thread:$0]  %s1539, 1024, %s1537, %s1520, 128, 128, 8
        $region64: #{tpu_custom_call.1} parent=35 // pred_fallthru
          _
      $region36: #{tpu_custom_call.1} parent=5 // pred_fallthru
        _
      %p1545 = scmp.le.s32.totalorder 2, %s20
      // Predicated region
      $region65: #{tpu_custom_call.1} parent=5 // pred_check
        %p1546 = pneg %p1545
      $region66: #{tpu_custom_call.1} parent=5 // pred_check_branch
        %1548 = sbr.rel (%p1546) target = $region68
      $region67: #{tpu_custom_call.1} parent=5 // pred_region
        %s1549 = ssub.s32 %s20, 2
        // Predicated region
        $region69: #{tpu_custom_call.1} parent=67 // pred_check
          %p1550 = pneg %p190
        $region70: #{tpu_custom_call.1} parent=67 // pred_check_branch
          %1552 = sbr.rel (%p1550) target = $region72
        $region71: #{tpu_custom_call.1} parent=67 // pred_region
          %s1553 = sand.u32 %s175, 1
          %s1554 = scalar_lea.sflag [#allocation8], %s1553
          %s1555 = sand.u32 %s175, 1
          %s1556 = smul.addr %s1555, 64
          %s1557 = scalar_lea.vmem [#allocation14], %s1556
          %1558 = dma.done %s1554, 1024
        $region72: #{tpu_custom_call.1} parent=67 // pred_fallthru
          _
      $region68: #{tpu_custom_call.1} parent=5 // pred_fallthru
        _
    $region6: #{tpu_custom_call.1} parent=1 // loop_footer
      %s24 = sadd.s32 1, %s20
    $region7: #{tpu_custom_call.1} parent=1 // loop_footer_branch
      %19 = sbr.rel target = $region3
    $region8: #{tpu_custom_call.1} parent=1 // loop_exit
      _
    %1559 = vsyncpa [#allocation7], 1
    %s1560 = scalar_lea.sflag [#allocation7], 1
    %1561 = vsyncpa %s1560, 1
    %1562 = vsyncpa [#allocation10], 1
    %s1563 = scalar_lea.sflag [#allocation10], 1
    %1564 = vsyncpa %s1563, 1
    %1565 = vsyncpa [#allocation13], 1
    %1566 = vsyncpa [#allocation8], 1
    %s1567 = scalar_lea.sflag [#allocation8], 1
    %1568 = vsyncpa %s1567, 1

</llo_original>
